<compile_context>
chip_gen: v6e
topology: v6e:2x2x1
jax: 0.10.0
libtpu: 0.0.40
codegen_flags: <defaults>
</compile_context>

<pallas_src>
import jax
import jax.numpy as jnp
from jax import lax
from jax.experimental import pallas as pl
from jax.experimental.pallas import tpu as pltpu

EPS = 1e-5


def layernorm_kernel(x_ref, g_ref, b_ref, o_ref):
    # x_ref: (TR, C) tile of rows; g_ref/b_ref: (1, C) affine params.
    x = x_ref[...].astype(jnp.float32)
    c_inv = jnp.float32(1.0 / x.shape[-1])

    # Two-pass statistics (torch.nn.LayerNorm numerics): mean, then centered
    # sum of squares. Both reductions are cross-lane (XLU); rsqrt goes to EUP.
    mean = jnp.sum(x, axis=-1, keepdims=True) * c_inv
    d = x - mean
    var = jnp.sum(d * d, axis=-1, keepdims=True) * c_inv
    inv = lax.rsqrt(var + EPS)  # EUP slot

    g = g_ref[...].astype(jnp.float32)
    b = b_ref[...].astype(jnp.float32)
    scale = inv * g                       # (TR,1) x (1,C) broadcast
    y = d * scale + b                     # reuse centered tensor: one VPU pass
    o_ref[...] = y.astype(o_ref.dtype)


def _num_tensorcores() -> int:
    """Best-effort TensorCore count via pltpu.get_tpu_info(); defaults to 1."""
    try:
        info = pltpu.get_tpu_info()
    except Exception:
        return 1
    for attr in ("num_cores", "tensorcores_per_chip", "cores_per_chip",
                 "num_tensorcores", "core_count"):
        n = getattr(info, attr, None)
        if isinstance(n, int) and n > 0:
            return n
    return 1


def layernorm_pallas(x, gamma, beta, *, num_row_blocks=None):
    # x: [..., C]; LayerNorm over the last dim with elementwise affine.
    # I/O dtype follows x (bf16 accepted); compute is f32 inside the kernel.
    orig_shape = x.shape
    C = orig_shape[-1]
    x2 = x.reshape(-1, C)
    R = x2.shape[0]
    g2 = gamma.reshape(1, C)
    b2 = beta.reshape(1, C)

    n_cores = _num_tensorcores()

    if num_row_blocks is None:
        # Two blocks by default: on 1-TC chips it overlaps writeback of block 0
        # with prefetch/compute of block 1; on 2-TC chips each TC gets a block.
        num_row_blocks = 2
    # Fall back to a single full-extent block if the split would violate the
    # (8, 128) sublane constraint or not divide evenly.
    if num_row_blocks > 1 and (R % num_row_blocks != 0 or (R // num_row_blocks) % 8 != 0):
        num_row_blocks = 1
    tile_rows = R // num_row_blocks

    # Only request cross-TensorCore distribution when the hardware reports >1
    # TC and the grid can actually be spread across them.
    if num_row_blocks > 1 and n_cores > 1 and num_row_blocks % n_cores == 0:
        semantics = (pltpu.CORE_PARALLEL,)
    else:
        semantics = ("arbitrary",)

    itemsize = jnp.dtype(x.dtype).itemsize
    cost = pl.CostEstimate(
        flops=8 * R * C,                      # sums, center, sq, scale+shift
        transcendentals=R,                    # one rsqrt per row
        bytes_accessed=2 * R * C * itemsize + 2 * C * itemsize,
    )

    out = pl.pallas_call(
        layernorm_kernel,
        out_shape=jax.ShapeDtypeStruct((R, C), x.dtype),
        grid_spec=pl.GridSpec(
            grid=(num_row_blocks,),
            in_specs=[
                pl.BlockSpec((tile_rows, C), lambda i: (i, 0)),
                # Constant (0,0) index: gamma/beta are DMA'd once, not per step.
                pl.BlockSpec((1, C), lambda i: (0, 0)),
                pl.BlockSpec((1, C), lambda i: (0, 0)),
            ],
            out_specs=pl.BlockSpec((tile_rows, C), lambda i: (i, 0)),
        ),
        compiler_params=pltpu.CompilerParams(
            dimension_semantics=semantics,
        ),
        cost_estimate=cost,
    )(x2, g2, b2)
    return out.reshape(orig_shape)


def layernorm_ref(x, gamma, beta):
    xf = x.astype(jnp.float32)
    mean = jnp.mean(xf, axis=-1, keepdims=True)
    var = jnp.mean((xf - mean) ** 2, axis=-1, keepdims=True)
    y = (xf - mean) * lax.rsqrt(var + EPS) * gamma + beta
    return y.astype(x.dtype)


if __name__ == "__main__":
    key = jax.random.PRNGKey(0)
    kx, kg, kb = jax.random.split(key, 3)

    # Input matching the module's forward: x55 of shape [1, 28, 28, 384]
    x = jax.random.normal(kx, (1, 28, 28, 384), dtype=jnp.float32)

    # PyTorch default affine is weight=1, bias=0; perturb deterministically so
    # the affine path is actually exercised.
    gamma = 1.0 + 0.01 * jax.random.normal(kg, (384,), dtype=jnp.float32)
    beta = 0.01 * jax.random.normal(kb, (384,), dtype=jnp.float32)

    y = layernorm_pallas(x, gamma, beta)
    y = jax.block_until_ready(y)

    y_ref = layernorm_ref(x, gamma, beta)
    assert y.shape == (1, 28, 28, 384)
    assert jnp.max(jnp.abs(y - y_ref)) < 1e-4

    print("KERNEL_OK")
</pallas_src>

<mosaic_0001>
module attributes {stable_mosaic.version = 11 : i64} {
  func.func @layernorm_kernel(%arg0: i32, %arg1: memref<392x384xf32, #tpu.memory_space<vmem>>, %arg2: memref<1x384xf32, #tpu.memory_space<vmem>>, %arg3: memref<1x384xf32, #tpu.memory_space<vmem>>, %arg4: memref<392x384xf32, #tpu.memory_space<vmem>>) attributes {dimension_semantics = [#tpu.dimension_semantics<arbitrary>], iteration_bounds = array<i64: 2>, scalar_prefetch = 0 : i64, scratch_operands = 0 : i64, tpu.core_type = #tpu.core_type<tc>, window_params = [{transform_indices = @transform_0, window_bounds = array<i64: 392, 384>}, {pipeline_mode = #tpu.pipeline_mode<synchronous>, transform_indices = @transform_1, window_bounds = array<i64: 1, 384>}, {pipeline_mode = #tpu.pipeline_mode<synchronous>, transform_indices = @transform_2, window_bounds = array<i64: 1, 384>}, {transform_indices = @transform_3, window_bounds = array<i64: 392, 384>}]} {
    %c0 = arith.constant 0 : index
    %c0_0 = arith.constant 0 : index
    %0 = vector.load %arg1[%c0, %c0_0] : memref<392x384xf32, #tpu.memory_space<vmem>>, vector<392x384xf32>
    %cst = arith.constant dense<0.000000e+00> : vector<392xf32>
    %1 = vector.multi_reduction <add>, %0, %cst [1] : vector<392x384xf32> to vector<392xf32>
    %2 = vector.shape_cast %1 : vector<392xf32> to vector<392x1xf32>
    %cst_1 = arith.constant 0.00260416674 : f32
    %3 = vector.broadcast %cst_1 : f32 to vector<392x1xf32>
    %4 = arith.mulf %2, %3 : vector<392x1xf32>
    %5 = vector.broadcast %4 : vector<392x1xf32> to vector<392x384xf32>
    %6 = arith.subf %0, %5 : vector<392x384xf32>
    %7 = arith.mulf %6, %6 : vector<392x384xf32>
    %cst_2 = arith.constant dense<0.000000e+00> : vector<392xf32>
    %8 = vector.multi_reduction <add>, %7, %cst_2 [1] : vector<392x384xf32> to vector<392xf32>
    %9 = vector.shape_cast %8 : vector<392xf32> to vector<392x1xf32>
    %cst_3 = arith.constant 0.00260416674 : f32
    %10 = vector.broadcast %cst_3 : f32 to vector<392x1xf32>
    %11 = arith.mulf %9, %10 : vector<392x1xf32>
    %cst_4 = arith.constant 9.99999974E-6 : f32
    %12 = vector.broadcast %cst_4 : f32 to vector<392x1xf32>
    %13 = arith.addf %11, %12 : vector<392x1xf32>
    %14 = math.rsqrt %13 : vector<392x1xf32>
    %c0_5 = arith.constant 0 : index
    %c0_6 = arith.constant 0 : index
    %15 = vector.load %arg2[%c0_5, %c0_6] : memref<1x384xf32, #tpu.memory_space<vmem>>, vector<1x384xf32>
    %c0_7 = arith.constant 0 : index
    %c0_8 = arith.constant 0 : index
    %16 = vector.load %arg3[%c0_7, %c0_8] : memref<1x384xf32, #tpu.memory_space<vmem>>, vector<1x384xf32>
    %17 = vector.broadcast %14 : vector<392x1xf32> to vector<392x384xf32>
    %18 = vector.broadcast %15 : vector<1x384xf32> to vector<392x384xf32>
    %19 = arith.mulf %17, %18 : vector<392x384xf32>
    %20 = arith.mulf %6, %19 : vector<392x384xf32>
    %21 = vector.broadcast %16 : vector<1x384xf32> to vector<392x384xf32>
    %22 = arith.addf %20, %21 : vector<392x384xf32>
    %c0_9 = arith.constant 0 : index
    %c0_10 = arith.constant 0 : index
    %23 = vector.load %arg4[%c0_9, %c0_10] : memref<392x384xf32, #tpu.memory_space<vmem>>, vector<392x384xf32>
    tpu.vector_store %arg4[%c0_9, %c0_10], %22 {strides = array<i32>} : memref<392x384xf32, #tpu.memory_space<vmem>>, vector<392x384xf32>,
    return
  }
  func.func @transform_0(%arg0: i32) -> (i32, i32) {
    %c0_i32 = arith.constant 0 : i32
    %c0_i32_0 = arith.constant 0 : i32
    return %arg0, %c0_i32 : i32, i32
  }
  func.func @transform_1(%arg0: i32) -> (i32, i32) {
    %c0_i32 = arith.constant 0 : i32
    %c0_i32_0 = arith.constant 0 : i32
    %c0_i32_1 = arith.constant 0 : i32
    return %c0_i32, %c0_i32_0 : i32, i32
  }
  func.func @transform_2(%arg0: i32) -> (i32, i32) {
    %c0_i32 = arith.constant 0 : i32
    %c0_i32_0 = arith.constant 0 : i32
    %c0_i32_1 = arith.constant 0 : i32
    return %c0_i32, %c0_i32_0 : i32, i32
  }
  func.func @transform_3(%arg0: i32) -> (i32, i32) {
    %c0_i32 = arith.constant 0 : i32
    %c0_i32_0 = arith.constant 0 : i32
    return %arg0, %c0_i32 : i32, i32
  }
}

</mosaic_0001>

<llo_original>
// kernel: tpu_custom_call.1
$region0: #{tpu_custom_call.1}
  #allocation0 [shape = 'u32[]', space=smem, size = 0x4, offset = 0x4, fixed_abs, tag = 'smem constant byte address 0x4 - core index']
  #allocation1 [shape = 'u32[144,128]{1,0:T(1,128)}', space=vmem, size = 0x12000, scoped, tag = 'internal scratch']
  %s0 = inlined_call_operand.hbm [shape: f32[784,384], index: 0, kind: input, shape index: {}]
  %s1 = inlined_call_operand.hbm [shape: f32[1,384], index: 1, kind: input, shape index: {}]
  %s2 = inlined_call_operand.hbm [shape: f32[1,384], index: 2, kind: input, shape index: {}]
  %s3 = inlined_call_operand.hbm [shape: f32[784,384], index: 3, kind: output, shape index: {}]
  %s4 = sld [smem:[#allocation0]]
  $region57: #{tpu_custom_call.1} parent=0
    _
  %s6 = ssub.s32 1, %s4
  %s7 = scalar_select 0, %s6, %s4
  $region1: #{tpu_custom_call.1} parent=0
    #allocation2 [shape = 'u8[1204224]{0}', space=vmem, size = 0x126000, scoped, tag = 'input window, operand 0']
    #allocation3 [shape = 's32[2]{0}', space=sflag, size = 0x8, scoped, tag = 'scoped memory for tpu_custom_call.1']
    #allocation4 [shape = 's32[2]{0}', space=sflag, size = 0x8, scoped, tag = 'scoped memory for tpu_custom_call.1']
    #allocation5 [shape = 'u8[1536]{0}', space=vmem, size = 0x800, scoped, tag = 'input window, operand 1, single buffered']
    #allocation6 [shape = 's32[1]{0}', space=sflag, size = 0x4, scoped, tag = 'scoped memory for tpu_custom_call.1']
    #allocation7 [shape = 'u8[1536]{0}', space=vmem, size = 0x800, scoped, tag = 'input window, operand 2, single buffered']
    #allocation8 [shape = 'u8[1204224]{0}', space=vmem, size = 0x126000, scoped, tag = 'output window, operand 0']
    %8 = vsyncpa [#allocation3], 0
    %s9 = scalar_lea.sflag [#allocation3], 1
    %10 = vsyncpa %s9, 0
    %11 = vsyncpa [#allocation6], 0
    %12 = vsyncpa [#allocation4], 0
    %s13 = scalar_lea.sflag [#allocation4], 1
    %14 = vsyncpa %s13, 0
    loop: start=0, step=1, limit=4
    $region2: #{tpu_custom_call.1} parent=1 // loop_pre_header
      _
    $region3: #{tpu_custom_call.1} parent=1 // loop_header
      %s16 = sphi 0, %s20
      %p17 = scmp.ge.s32.totalorder %s16, 4
      %s26 = sphi 0, %s28
      %s29 = sphi 0, %s26
      %s30 = sphi 0, %s29
      %s46 = sphi 0, %s30
      %s50 = sphi 0, %s50
      %s52 = sphi 0, %s50
      %s53 = sphi 0, %s52
      %s67 = sphi 0, %s53
      %s71 = sphi 0, %s71
      %s73 = sphi 0, %s71
      %s74 = sphi 0, %s73
      %s88 = sphi 0, %s74
      %s94 = sphi 0, %s96
      %s97 = sphi 0, %s94
      %s98 = sphi 0, %s97
      %s114 = sphi 0, %s98
    $region4: #{tpu_custom_call.1} parent=1 // loop_header_branch
      %19 = sbr.rel (%p17) target = $region8
    $region5: #{tpu_custom_call.1} parent=1 // loop_body
      %s21 = ssub.s32 %s16, 1
      %s22 = ssub.s32 %s16, 2
      %s23 = sadd.s32 %s16, 1
      %s24 = ssub.s32 %s16, %s23
      %p25 = scmp.eq.s32.totalorder %s24, 0
      %s27 = sadd.s32 %s26, 1
      %s28 = scalar_select %p25, %s26, %s27
      %p31 = pneg %p25
      %p32 = scmp.eq.s32.totalorder %s16, 1
      %p33 = por %p31, %p32
      %p34 = scmp.ne.s32.totalorder %s26, %s29
      %p35 = scmp.eq.s32.totalorder %s16, 0
      %p36 = por %p34, %p35
      %p37 = scmp.ne.s32.totalorder %s26, %s29
      %p38 = scmp.eq.s32.totalorder %s21, 1
      %p39 = por %p37, %p38
      %p40 = scmp.ne.s32.totalorder %s29, %s30
      %p41 = scmp.eq.s32.totalorder %s21, 0
      %p42 = por %p40, %p41
      %p43 = scmp.ne.s32.totalorder %s29, %s30
      %p44 = scmp.eq.s32.totalorder %s22, 1
      %p45 = por %p43, %p44
      %p47 = scmp.ne.s32.totalorder %s30, %s46
      %p48 = scmp.eq.s32.totalorder %s22, 0
      %p49 = por %p47, %p48
      %s51 = sadd.s32 %s50, 1
      %p54 = scmp.eq.s32.totalorder %s16, 1
      %p55 = scmp.ne.s32.totalorder %s50, %s52
      %p56 = scmp.eq.s32.totalorder %s16, 0
      %p57 = por %p55, %p56
      %p58 = scmp.ne.s32.totalorder %s50, %s52
      %p59 = scmp.eq.s32.totalorder %s21, 1
      %p60 = por %p58, %p59
      %p61 = scmp.ne.s32.totalorder %s52, %s53
      %p62 = scmp.eq.s32.totalorder %s21, 0
      %p63 = por %p61, %p62
      %p64 = scmp.ne.s32.totalorder %s52, %s53
      %p65 = scmp.eq.s32.totalorder %s22, 1
      %p66 = por %p64, %p65
      %p68 = scmp.ne.s32.totalorder %s53, %s67
      %p69 = scmp.eq.s32.totalorder %s22, 0
      %p70 = por %p68, %p69
      %s72 = sadd.s32 %s71, 1
      %p75 = scmp.eq.s32.totalorder %s16, 1
      %p76 = scmp.ne.s32.totalorder %s71, %s73
      %p77 = scmp.eq.s32.totalorder %s16, 0
      %p78 = por %p76, %p77
      %p79 = scmp.ne.s32.totalorder %s71, %s73
      %p80 = scmp.eq.s32.totalorder %s21, 1
      %p81 = por %p79, %p80
      %p82 = scmp.ne.s32.totalorder %s73, %s74
      %p83 = scmp.eq.s32.totalorder %s21, 0
      %p84 = por %p82, %p83
      %p85 = scmp.ne.s32.totalorder %s73, %s74
      %p86 = scmp.eq.s32.totalorder %s22, 1
      %p87 = por %p85, %p86
      %p89 = scmp.ne.s32.totalorder %s74, %s88
      %p90 = scmp.eq.s32.totalorder %s22, 0
      %p91 = por %p89, %p90
      %s92 = ssub.s32 %s16, %s23
      %p93 = scmp.eq.s32.totalorder %s92, 0
      %s95 = sadd.s32 %s94, 1
      %s96 = scalar_select %p93, %s94, %s95
      %p99 = pneg %p93
      %p100 = scmp.eq.s32.totalorder %s16, 1
      %p101 = por %p99, %p100
      %p102 = scmp.ne.s32.totalorder %s94, %s97
      %p103 = scmp.eq.s32.totalorder %s16, 0
      %p104 = por %p102, %p103
      %p105 = scmp.ne.s32.totalorder %s94, %s97
      %p106 = scmp.eq.s32.totalorder %s21, 1
      %p107 = por %p105, %p106
      %p108 = scmp.ne.s32.totalorder %s97, %s98
      %p109 = scmp.eq.s32.totalorder %s21, 0
      %p110 = por %p108, %p109
      %p111 = scmp.ne.s32.totalorder %s97, %s98
      %p112 = scmp.eq.s32.totalorder %s22, 1
      %p113 = por %p111, %p112
      %p115 = scmp.ne.s32.totalorder %s98, %s114
      %p116 = scmp.eq.s32.totalorder %s22, 0
      %p117 = por %p115, %p116
      %p118 = scmp.le.s32.totalorder 1, %s16
      %p119 = scmp.lt.s32.totalorder %s16, 3
      %p120 = pnand %p118, %p119
      %p121 = pneg %p120
      // Predicated region
      $region9: #{tpu_custom_call.1} parent=5 // pred_check
        _
      $region10: #{tpu_custom_call.1} parent=5 // pred_check_branch
        %123 = sbr.rel (%p120) target = $region12
      $region11: #{tpu_custom_call.1} parent=5 // pred_region
        %s124 = ssub.s32 %s16, 1
        // Predicated region
        $region13: #{tpu_custom_call.1} parent=11 // pred_check
          %p125 = pneg %p63
        $region14: #{tpu_custom_call.1} parent=11 // pred_check_branch
          %127 = sbr.rel (%p125) target = $region16
        $region15: #{tpu_custom_call.1} parent=11 // pred_region
          %s129 = ssub.s32 48, 48
          %130 = vsyncadd [#allocation6], %s129
          %s132 = sshll.u32 [#allocation5], 4
          %s133 = int_to_ptr.vmem [resolvable:$true] %s132
          %135 = dma.hbm_to_vmem [thread:$0]  %s1, 48, %s133, [#allocation6]
        $region16: #{tpu_custom_call.1} parent=11 // pred_fallthru
          _
        // Predicated region
        $region17: #{tpu_custom_call.1} parent=11 // pred_check
          %p136 = pneg %p84
        $region18: #{tpu_custom_call.1} parent=11 // pred_check_branch
          %138 = sbr.rel (%p136) target = $region20
        $region19: #{tpu_custom_call.1} parent=11 // pred_region
          %s140 = ssub.s32 48, 48
          %141 = vsyncadd [#allocation6], %s140
          %s143 = sshll.u32 [#allocation7], 4
          %s144 = int_to_ptr.vmem [resolvable:$true] %s143
          %146 = dma.hbm_to_vmem [thread:$0]  %s2, 48, %s144, [#allocation6]
        $region20: #{tpu_custom_call.1} parent=11 // pred_fallthru
          _
      $region12: #{tpu_custom_call.1} parent=5 // pred_fallthru
        _
      %p147 = scmp.lt.s32.totalorder %s16, 2
      // Predicated region
      $region21: #{tpu_custom_call.1} parent=5 // pred_check
        %p148 = pneg %p147
      $region22: #{tpu_custom_call.1} parent=5 // pred_check_branch
        %150 = sbr.rel (%p148) target = $region24
      $region23: #{tpu_custom_call.1} parent=5 // pred_region
        // Predicated region
        $region25: #{tpu_custom_call.1} parent=23 // pred_check
          %p151 = pneg %p36
        $region26: #{tpu_custom_call.1} parent=23 // pred_check_branch
          %153 = sbr.rel (%p151) target = $region28
        $region27: #{tpu_custom_call.1} parent=23 // pred_region
          %s154 = sand.u32 %s26, 1
          %s155 = scalar_lea.sflag [#allocation3], %s154
          %s156 = sand.u32 %s26, 1
          %s157 = smul.addr %s156, 1176
          %s158 = scalar_lea.vmem [#allocation2], %s157
          %s159 = smul.u32 49, %s16
          %s161 = ssub.s32 18816, 18816
          %162 = vsyncadd %s155, %s161
          %s163 = smul.addr %s159, 3
          %s164 = smul.addr %s163, 128
          %s165 = scalar_lea.hbm %s0, %s164
          %s166 = sshll.u32 %s158, 4
          %s167 = int_to_ptr.vmem [resolvable:$true] %s166
          %172 = dma.hbm_to_vmem [thread:$0]  %s165, 18816, %s167, %s155, 384, 384, 24
        $region28: #{tpu_custom_call.1} parent=23 // pred_fallthru
          _
      $region24: #{tpu_custom_call.1} parent=5 // pred_fallthru
        _
      %p173 = scmp.le.s32.totalorder 1, %s16
      %p174 = scmp.lt.s32.totalorder %s16, 3
      %p175 = pnand %p173, %p174
      %p176 = pneg %p175
      // Predicated region
      $region29: #{tpu_custom_call.1} parent=5 // pred_check
        _
      $region30: #{tpu_custom_call.1} parent=5 // pred_check_branch
        %178 = sbr.rel (%p175) target = $region32
      $region31: #{tpu_custom_call.1} parent=5 // pred_region
        %s179 = ssub.s32 %s16, 1
        %s180 = sand.u32 %s29, 1
        %s181 = scalar_lea.sflag [#allocation3], %s180
        %s182 = sand.u32 %s29, 1
        %s183 = smul.addr %s182, 1176
        %s184 = scalar_lea.vmem [#allocation2], %s183
        // Predicated region
        $region33: #{tpu_custom_call.1} parent=31 // pred_check
          %p185 = pneg %p42
        $region34: #{tpu_custom_call.1} parent=31 // pred_check_branch
          %187 = sbr.rel (%p185) target = $region36
        $region35: #{tpu_custom_call.1} parent=31 // pred_region
          %188 = dma.done %s181, 18816
        $region36: #{tpu_custom_call.1} parent=31 // pred_fallthru
          _
        // Predicated region
        $region37: #{tpu_custom_call.1} parent=31 // pred_check
          %p189 = pneg %p63
        $region38: #{tpu_custom_call.1} parent=31 // pred_check_branch
          %191 = sbr.rel (%p189) target = $region40
        $region39: #{tpu_custom_call.1} parent=31 // pred_region
          %192 = dma.done [#allocation6], 48
        $region40: #{tpu_custom_call.1} parent=31 // pred_fallthru
          _
        // Predicated region
        $region41: #{tpu_custom_call.1} parent=31 // pred_check
          %p193 = pneg %p84
        $region42: #{tpu_custom_call.1} parent=31 // pred_check_branch
          %195 = sbr.rel (%p193) target = $region44
        $region43: #{tpu_custom_call.1} parent=31 // pred_region
          %196 = dma.done [#allocation6], 48
        $region44: #{tpu_custom_call.1} parent=31 // pred_fallthru
          _
        %s197 = sand.u32 %s29, 1
        %s198 = scalar_lea.sflag [#allocation3], %s197
        %s199 = sand.u32 %s29, 1
        %s200 = smul.addr %s199, 1176
        %s201 = scalar_lea.vmem [#allocation2], %s200
        %p202 = pneg %p42
        %p203 = pneg %p39
        %p204 = pneg %p63
        %p205 = pneg %p60
        %p206 = pneg %p84
        %p207 = pneg %p81
        %p208 = pneg %p110
        %p209 = pneg %p107
        %s210 = sand.u32 %s97, 1
        %s211 = scalar_lea.sflag [#allocation4], %s210
        %s212 = sand.u32 %s97, 1
        %s213 = smul.addr %s212, 1176
        %s214 = scalar_lea.vmem [#allocation8], %s213
        %s215 = smul.u32 49, %s21
        %s216 = smul.u32 49, %s21
        %v217 = vld [vmem:[%s184] sm:$0xff]
        %v218 = vld [vmem:[%s184 + $0x8] sm:$0xff]
        %v219 = vld [vmem:[%s184 + $0x10] sm:$0xff]
        %v220 = vld [vmem:[%s184 + $0x18] sm:$0xff]
        %v221 = vld [vmem:[%s184 + $0x20] sm:$0xff]
        %v222 = vld [vmem:[%s184 + $0x28] sm:$0xff]
        %v223 = vld [vmem:[%s184 + $0x30] sm:$0xff]
        %v224 = vld [vmem:[%s184 + $0x38] sm:$0xff]
        %v225 = vld [vmem:[%s184 + $0x40] sm:$0xff]
        %v226 = vld [vmem:[%s184 + $0x48] sm:$0xff]
        %v227 = vld [vmem:[%s184 + $0x50] sm:$0xff]
        %v228 = vld [vmem:[%s184 + $0x58] sm:$0xff]
        %v229 = vld [vmem:[%s184 + $0x60] sm:$0xff]
        %v230 = vld [vmem:[%s184 + $0x68] sm:$0xff]
        %v231 = vld [vmem:[%s184 + $0x70] sm:$0xff]
        %v232 = vld [vmem:[%s184 + $0x78] sm:$0xff]
        %v233 = vld [vmem:[%s184 + $0x80] sm:$0xff]
        %v234 = vld [vmem:[%s184 + $0x88] sm:$0xff]
        %v235 = vld [vmem:[%s184 + $0x90] sm:$0xff]
        %v236 = vld [vmem:[%s184 + $0x98] sm:$0xff]
        %v237 = vld [vmem:[%s184 + $0xa0] sm:$0xff]
        %v238 = vld [vmem:[%s184 + $0xa8] sm:$0xff]
        %v239 = vld [vmem:[%s184 + $0xb0] sm:$0xff]
        %v240 = vld [vmem:[%s184 + $0xb8] sm:$0xff]
        %v241 = vld [vmem:[%s184 + $0xc0] sm:$0xff]
        %v242 = vld [vmem:[%s184 + $0xc8] sm:$0xff]
        %v243 = vld [vmem:[%s184 + $0xd0] sm:$0xff]
        %v244 = vld [vmem:[%s184 + $0xd8] sm:$0xff]
        %v245 = vld [vmem:[%s184 + $0xe0] sm:$0xff]
        %v246 = vld [vmem:[%s184 + $0xe8] sm:$0xff]
        %v247 = vld [vmem:[%s184 + $0xf0] sm:$0xff]
        %v248 = vld [vmem:[%s184 + $0xf8] sm:$0xff]
        %v249 = vld [vmem:[%s184 + $0x100] sm:$0xff]
        %v250 = vld [vmem:[%s184 + $0x108] sm:$0xff]
        %v251 = vld [vmem:[%s184 + $0x110] sm:$0xff]
        %v252 = vld [vmem:[%s184 + $0x118] sm:$0xff]
        %v253 = vld [vmem:[%s184 + $0x120] sm:$0xff]
        %v254 = vld [vmem:[%s184 + $0x128] sm:$0xff]
        %v255 = vld [vmem:[%s184 + $0x130] sm:$0xff]
        %v256 = vld [vmem:[%s184 + $0x138] sm:$0xff]
        %v257 = vld [vmem:[%s184 + $0x140] sm:$0xff]
        %v258 = vld [vmem:[%s184 + $0x148] sm:$0xff]
        %v259 = vld [vmem:[%s184 + $0x150] sm:$0xff]
        %v260 = vld [vmem:[%s184 + $0x158] sm:$0xff]
        %v261 = vld [vmem:[%s184 + $0x160] sm:$0xff]
        %v262 = vld [vmem:[%s184 + $0x168] sm:$0xff]
        %v263 = vld [vmem:[%s184 + $0x170] sm:$0xff]
        %v264 = vld [vmem:[%s184 + $0x178] sm:$0xff]
        %v265 = vld [vmem:[%s184 + $0x180] sm:$0xff]
        %v266 = vld [vmem:[%s184 + $0x188] sm:$0xff]
        %v267 = vld [vmem:[%s184 + $0x190] sm:$0xff]
        %v268 = vld [vmem:[%s184 + $0x198] sm:$0xff]
        %v269 = vld [vmem:[%s184 + $0x1a0] sm:$0xff]
        %v270 = vld [vmem:[%s184 + $0x1a8] sm:$0xff]
        %v271 = vld [vmem:[%s184 + $0x1b0] sm:$0xff]
        %v272 = vld [vmem:[%s184 + $0x1b8] sm:$0xff]
        %v273 = vld [vmem:[%s184 + $0x1c0] sm:$0xff]
        %v274 = vld [vmem:[%s184 + $0x1c8] sm:$0xff]
        %v275 = vld [vmem:[%s184 + $0x1d0] sm:$0xff]
        %v276 = vld [vmem:[%s184 + $0x1d8] sm:$0xff]
        %v277 = vld [vmem:[%s184 + $0x1e0] sm:$0xff]
        %v278 = vld [vmem:[%s184 + $0x1e8] sm:$0xff]
        %v279 = vld [vmem:[%s184 + $0x1f0] sm:$0xff]
        %v280 = vld [vmem:[%s184 + $0x1f8] sm:$0xff]
        %v281 = vld [vmem:[%s184 + $0x200] sm:$0xff]
        %v282 = vld [vmem:[%s184 + $0x208] sm:$0xff]
        %v283 = vld [vmem:[%s184 + $0x210] sm:$0xff]
        %v284 = vld [vmem:[%s184 + $0x218] sm:$0xff]
        %v285 = vld [vmem:[%s184 + $0x220] sm:$0xff]
        %v286 = vld [vmem:[%s184 + $0x228] sm:$0xff]
        %v287 = vld [vmem:[%s184 + $0x230] sm:$0xff]
        %v288 = vld [vmem:[%s184 + $0x238] sm:$0xff]
        %v289 = vld [vmem:[%s184 + $0x240] sm:$0xff]
        %v290 = vld [vmem:[%s184 + $0x248] sm:$0xff]
        %v291 = vld [vmem:[%s184 + $0x250] sm:$0xff]
        %v292 = vld [vmem:[%s184 + $0x258] sm:$0xff]
        %v293 = vld [vmem:[%s184 + $0x260] sm:$0xff]
        %v294 = vld [vmem:[%s184 + $0x268] sm:$0xff]
        %v295 = vld [vmem:[%s184 + $0x270] sm:$0xff]
        %v296 = vld [vmem:[%s184 + $0x278] sm:$0xff]
        %v297 = vld [vmem:[%s184 + $0x280] sm:$0xff]
        %v298 = vld [vmem:[%s184 + $0x288] sm:$0xff]
        %v299 = vld [vmem:[%s184 + $0x290] sm:$0xff]
        %v300 = vld [vmem:[%s184 + $0x298] sm:$0xff]
        %v301 = vld [vmem:[%s184 + $0x2a0] sm:$0xff]
        %v302 = vld [vmem:[%s184 + $0x2a8] sm:$0xff]
        %v303 = vld [vmem:[%s184 + $0x2b0] sm:$0xff]
        %v304 = vld [vmem:[%s184 + $0x2b8] sm:$0xff]
        %v305 = vld [vmem:[%s184 + $0x2c0] sm:$0xff]
        %v306 = vld [vmem:[%s184 + $0x2c8] sm:$0xff]
        %v307 = vld [vmem:[%s184 + $0x2d0] sm:$0xff]
        %v308 = vld [vmem:[%s184 + $0x2d8] sm:$0xff]
        %v309 = vld [vmem:[%s184 + $0x2e0] sm:$0xff]
        %v310 = vld [vmem:[%s184 + $0x2e8] sm:$0xff]
        %v311 = vld [vmem:[%s184 + $0x2f0] sm:$0xff]
        %v312 = vld [vmem:[%s184 + $0x2f8] sm:$0xff]
        %v313 = vld [vmem:[%s184 + $0x300] sm:$0xff]
        %v314 = vld [vmem:[%s184 + $0x308] sm:$0xff]
        %v315 = vld [vmem:[%s184 + $0x310] sm:$0xff]
        %v316 = vld [vmem:[%s184 + $0x318] sm:$0xff]
        %v317 = vld [vmem:[%s184 + $0x320] sm:$0xff]
        %v318 = vld [vmem:[%s184 + $0x328] sm:$0xff]
        %v319 = vld [vmem:[%s184 + $0x330] sm:$0xff]
        %v320 = vld [vmem:[%s184 + $0x338] sm:$0xff]
        %v321 = vld [vmem:[%s184 + $0x340] sm:$0xff]
        %v322 = vld [vmem:[%s184 + $0x348] sm:$0xff]
        %v323 = vld [vmem:[%s184 + $0x350] sm:$0xff]
        %v324 = vld [vmem:[%s184 + $0x358] sm:$0xff]
        %v325 = vld [vmem:[%s184 + $0x360] sm:$0xff]
        %v326 = vld [vmem:[%s184 + $0x368] sm:$0xff]
        %v327 = vld [vmem:[%s184 + $0x370] sm:$0xff]
        %v328 = vld [vmem:[%s184 + $0x378] sm:$0xff]
        %v329 = vld [vmem:[%s184 + $0x380] sm:$0xff]
        %v330 = vld [vmem:[%s184 + $0x388] sm:$0xff]
        %v331 = vld [vmem:[%s184 + $0x390] sm:$0xff]
        %v332 = vld [vmem:[%s184 + $0x398] sm:$0xff]
        %v333 = vld [vmem:[%s184 + $0x3a0] sm:$0xff]
        %v334 = vld [vmem:[%s184 + $0x3a8] sm:$0xff]
        %v335 = vld [vmem:[%s184 + $0x3b0] sm:$0xff]
        %v336 = vld [vmem:[%s184 + $0x3b8] sm:$0xff]
        %v337 = vld [vmem:[%s184 + $0x3c0] sm:$0xff]
        %v338 = vld [vmem:[%s184 + $0x3c8] sm:$0xff]
        %v339 = vld [vmem:[%s184 + $0x3d0] sm:$0xff]
        %v340 = vld [vmem:[%s184 + $0x3d8] sm:$0xff]
        %v341 = vld [vmem:[%s184 + $0x3e0] sm:$0xff]
        %v342 = vld [vmem:[%s184 + $0x3e8] sm:$0xff]
        %v343 = vld [vmem:[%s184 + $0x3f0] sm:$0xff]
        %v344 = vld [vmem:[%s184 + $0x3f8] sm:$0xff]
        %v345 = vld [vmem:[%s184 + $0x400] sm:$0xff]
        %v346 = vld [vmem:[%s184 + $0x408] sm:$0xff]
        %v347 = vld [vmem:[%s184 + $0x410] sm:$0xff]
        %v348 = vld [vmem:[%s184 + $0x418] sm:$0xff]
        %v349 = vld [vmem:[%s184 + $0x420] sm:$0xff]
        %v350 = vld [vmem:[%s184 + $0x428] sm:$0xff]
        %v351 = vld [vmem:[%s184 + $0x430] sm:$0xff]
        %v352 = vld [vmem:[%s184 + $0x438] sm:$0xff]
        %v353 = vld [vmem:[%s184 + $0x440] sm:$0xff]
        %v354 = vld [vmem:[%s184 + $0x448] sm:$0xff]
        %v355 = vld [vmem:[%s184 + $0x450] sm:$0xff]
        %v356 = vld [vmem:[%s184 + $0x458] sm:$0xff]
        %v357 = vld [vmem:[%s184 + $0x460] sm:$0xff]
        %v358 = vld [vmem:[%s184 + $0x468] sm:$0xff]
        %v359 = vld [vmem:[%s184 + $0x470] sm:$0xff]
        %v360 = vld [vmem:[%s184 + $0x478] sm:$0xff]
        %v361 = vld [vmem:[%s184 + $0x480] sm:$0xff]
        %v362 = vld [vmem:[%s184 + $0x488] sm:$0xff]
        %v363 = vld [vmem:[%s184 + $0x490] sm:$0xff]
        %v364 = vadd.f32 %v217, %v218
        %v365 = vadd.f32 %v364, %v219
        %366 = vadd.xlane.f32.xlu0 %v365
        %v367 = vpop.xlane.xlu0 %366
        %v368 = vadd.f32 %v220, %v221
        %v369 = vadd.f32 %v368, %v222
        %370 = vadd.xlane.f32.xlu0 %v369
        %v371 = vpop.xlane.xlu0 %370
        %v372 = vadd.f32 %v223, %v224
        %v373 = vadd.f32 %v372, %v225
        %374 = vadd.xlane.f32.xlu0 %v373
        %v375 = vpop.xlane.xlu0 %374
        %v376 = vadd.f32 %v226, %v227
        %v377 = vadd.f32 %v376, %v228
        %378 = vadd.xlane.f32.xlu0 %v377
        %v379 = vpop.xlane.xlu0 %378
        %v380 = vadd.f32 %v229, %v230
        %v381 = vadd.f32 %v380, %v231
        %382 = vadd.xlane.f32.xlu0 %v381
        %v383 = vpop.xlane.xlu0 %382
        %v384 = vadd.f32 %v232, %v233
        %v385 = vadd.f32 %v384, %v234
        %386 = vadd.xlane.f32.xlu0 %v385
        %v387 = vpop.xlane.xlu0 %386
        %v388 = vadd.f32 %v235, %v236
        %v389 = vadd.f32 %v388, %v237
        %390 = vadd.xlane.f32.xlu0 %v389
        %v391 = vpop.xlane.xlu0 %390
        %v392 = vadd.f32 %v238, %v239
        %v393 = vadd.f32 %v392, %v240
        %394 = vadd.xlane.f32.xlu0 %v393
        %v395 = vpop.xlane.xlu0 %394
        %v396 = vadd.f32 %v241, %v242
        %v397 = vadd.f32 %v396, %v243
        %398 = vadd.xlane.f32.xlu0 %v397
        %v399 = vpop.xlane.xlu0 %398
        %v400 = vadd.f32 %v244, %v245
        %v401 = vadd.f32 %v400, %v246
        %402 = vadd.xlane.f32.xlu0 %v401
        %v403 = vpop.xlane.xlu0 %402
        %v404 = vadd.f32 %v247, %v248
        %v405 = vadd.f32 %v404, %v249
        %406 = vadd.xlane.f32.xlu0 %v405
        %v407 = vpop.xlane.xlu0 %406
        %v408 = vadd.f32 %v250, %v251
        %v409 = vadd.f32 %v408, %v252
        %410 = vadd.xlane.f32.xlu0 %v409
        %v411 = vpop.xlane.xlu0 %410
        %v412 = vadd.f32 %v253, %v254
        %v413 = vadd.f32 %v412, %v255
        %414 = vadd.xlane.f32.xlu0 %v413
        %v415 = vpop.xlane.xlu0 %414
        %v416 = vadd.f32 %v256, %v257
        %v417 = vadd.f32 %v416, %v258
        %418 = vadd.xlane.f32.xlu0 %v417
        %v419 = vpop.xlane.xlu0 %418
        %v420 = vadd.f32 %v259, %v260
        %v421 = vadd.f32 %v420, %v261
        %422 = vadd.xlane.f32.xlu0 %v421
        %v423 = vpop.xlane.xlu0 %422
        %v424 = vadd.f32 %v262, %v263
        %v425 = vadd.f32 %v424, %v264
        %426 = vadd.xlane.f32.xlu0 %v425
        %v427 = vpop.xlane.xlu0 %426
        %v428 = vadd.f32 %v265, %v266
        %v429 = vadd.f32 %v428, %v267
        %430 = vadd.xlane.f32.xlu0 %v429
        %v431 = vpop.xlane.xlu0 %430
        %v432 = vadd.f32 %v268, %v269
        %v433 = vadd.f32 %v432, %v270
        %434 = vadd.xlane.f32.xlu0 %v433
        %v435 = vpop.xlane.xlu0 %434
        %v436 = vadd.f32 %v271, %v272
        %v437 = vadd.f32 %v436, %v273
        %438 = vadd.xlane.f32.xlu0 %v437
        %v439 = vpop.xlane.xlu0 %438
        %v440 = vadd.f32 %v274, %v275
        %v441 = vadd.f32 %v440, %v276
        %442 = vadd.xlane.f32.xlu0 %v441
        %v443 = vpop.xlane.xlu0 %442
        %v444 = vadd.f32 %v277, %v278
        %v445 = vadd.f32 %v444, %v279
        %446 = vadd.xlane.f32.xlu0 %v445
        %v447 = vpop.xlane.xlu0 %446
        %v448 = vadd.f32 %v280, %v281
        %v449 = vadd.f32 %v448, %v282
        %450 = vadd.xlane.f32.xlu0 %v449
        %v451 = vpop.xlane.xlu0 %450
        %v452 = vadd.f32 %v283, %v284
        %v453 = vadd.f32 %v452, %v285
        %454 = vadd.xlane.f32.xlu0 %v453
        %v455 = vpop.xlane.xlu0 %454
        %v456 = vadd.f32 %v286, %v287
        %v457 = vadd.f32 %v456, %v288
        %458 = vadd.xlane.f32.xlu0 %v457
        %v459 = vpop.xlane.xlu0 %458
        %v460 = vadd.f32 %v289, %v290
        %v461 = vadd.f32 %v460, %v291
        %462 = vadd.xlane.f32.xlu0 %v461
        %v463 = vpop.xlane.xlu0 %462
        %v464 = vadd.f32 %v292, %v293
        %v465 = vadd.f32 %v464, %v294
        %466 = vadd.xlane.f32.xlu0 %v465
        %v467 = vpop.xlane.xlu0 %466
        %v468 = vadd.f32 %v295, %v296
        %v469 = vadd.f32 %v468, %v297
        %470 = vadd.xlane.f32.xlu0 %v469
        %v471 = vpop.xlane.xlu0 %470
        %v472 = vadd.f32 %v298, %v299
        %v473 = vadd.f32 %v472, %v300
        %474 = vadd.xlane.f32.xlu0 %v473
        %v475 = vpop.xlane.xlu0 %474
        %v476 = vadd.f32 %v301, %v302
        %v477 = vadd.f32 %v476, %v303
        %478 = vadd.xlane.f32.xlu0 %v477
        %v479 = vpop.xlane.xlu0 %478
        %v480 = vadd.f32 %v304, %v305
        %v481 = vadd.f32 %v480, %v306
        %482 = vadd.xlane.f32.xlu0 %v481
        %v483 = vpop.xlane.xlu0 %482
        %v484 = vadd.f32 %v307, %v308
        %v485 = vadd.f32 %v484, %v309
        %486 = vadd.xlane.f32.xlu0 %v485
        %v487 = vpop.xlane.xlu0 %486
        %v488 = vadd.f32 %v310, %v311
        %v489 = vadd.f32 %v488, %v312
        %490 = vadd.xlane.f32.xlu0 %v489
        %v491 = vpop.xlane.xlu0 %490
        %v492 = vadd.f32 %v313, %v314
        %v493 = vadd.f32 %v492, %v315
        %494 = vadd.xlane.f32.xlu0 %v493
        %v495 = vpop.xlane.xlu0 %494
        %v496 = vadd.f32 %v316, %v317
        %v497 = vadd.f32 %v496, %v318
        %498 = vadd.xlane.f32.xlu0 %v497
        %v499 = vpop.xlane.xlu0 %498
        %v500 = vadd.f32 %v319, %v320
        %v501 = vadd.f32 %v500, %v321
        %502 = vadd.xlane.f32.xlu0 %v501
        %v503 = vpop.xlane.xlu0 %502
        %v504 = vadd.f32 %v322, %v323
        %v505 = vadd.f32 %v504, %v324
        %506 = vadd.xlane.f32.xlu0 %v505
        %v507 = vpop.xlane.xlu0 %506
        %v508 = vadd.f32 %v325, %v326
        %v509 = vadd.f32 %v508, %v327
        %510 = vadd.xlane.f32.xlu0 %v509
        %v511 = vpop.xlane.xlu0 %510
        %v512 = vadd.f32 %v328, %v329
        %v513 = vadd.f32 %v512, %v330
        %514 = vadd.xlane.f32.xlu0 %v513
        %v515 = vpop.xlane.xlu0 %514
        %v516 = vadd.f32 %v331, %v332
        %v517 = vadd.f32 %v516, %v333
        %518 = vadd.xlane.f32.xlu0 %v517
        %v519 = vpop.xlane.xlu0 %518
        %v520 = vadd.f32 %v334, %v335
        %v521 = vadd.f32 %v520, %v336
        %522 = vadd.xlane.f32.xlu0 %v521
        %v523 = vpop.xlane.xlu0 %522
        %v524 = vadd.f32 %v337, %v338
        %v525 = vadd.f32 %v524, %v339
        %526 = vadd.xlane.f32.xlu0 %v525
        %v527 = vpop.xlane.xlu0 %526
        %v528 = vadd.f32 %v340, %v341
        %v529 = vadd.f32 %v528, %v342
        %530 = vadd.xlane.f32.xlu0 %v529
        %v531 = vpop.xlane.xlu0 %530
        %v532 = vadd.f32 %v343, %v344
        %v533 = vadd.f32 %v532, %v345
        %534 = vadd.xlane.f32.xlu0 %v533
        %v535 = vpop.xlane.xlu0 %534
        %v536 = vadd.f32 %v346, %v347
        %v537 = vadd.f32 %v536, %v348
        %538 = vadd.xlane.f32.xlu0 %v537
        %v539 = vpop.xlane.xlu0 %538
        %v540 = vadd.f32 %v349, %v350
        %v541 = vadd.f32 %v540, %v351
        %542 = vadd.xlane.f32.xlu0 %v541
        %v543 = vpop.xlane.xlu0 %542
        %v544 = vadd.f32 %v352, %v353
        %v545 = vadd.f32 %v544, %v354
        %546 = vadd.xlane.f32.xlu0 %v545
        %v547 = vpop.xlane.xlu0 %546
        %v548 = vadd.f32 %v355, %v356
        %v549 = vadd.f32 %v548, %v357
        %550 = vadd.xlane.f32.xlu0 %v549
        %v551 = vpop.xlane.xlu0 %550
        %v552 = vadd.f32 %v358, %v359
        %v553 = vadd.f32 %v552, %v360
        %554 = vadd.xlane.f32.xlu0 %v553
        %v555 = vpop.xlane.xlu0 %554
        %v556 = vadd.f32 %v361, %v362
        %v557 = vadd.f32 %v556, %v363
        %558 = vadd.xlane.f32.xlu0 %v557
        %v559 = vpop.xlane.xlu0 %558
        %v560 = vmul.f32 %v367, 0.0026041667
        %v561 = vmul.f32 %v371, 0.0026041667
        %v562 = vmul.f32 %v375, 0.0026041667
        %v563 = vmul.f32 %v379, 0.0026041667
        %v564 = vmul.f32 %v383, 0.0026041667
        %v565 = vmul.f32 %v387, 0.0026041667
        %v566 = vmul.f32 %v391, 0.0026041667
        %v567 = vmul.f32 %v395, 0.0026041667
        %v568 = vmul.f32 %v399, 0.0026041667
        %v569 = vmul.f32 %v403, 0.0026041667
        %v570 = vmul.f32 %v407, 0.0026041667
        %v571 = vmul.f32 %v411, 0.0026041667
        %v572 = vmul.f32 %v415, 0.0026041667
        %v573 = vmul.f32 %v419, 0.0026041667
        %v574 = vmul.f32 %v423, 0.0026041667
        %v575 = vmul.f32 %v427, 0.0026041667
        %v576 = vmul.f32 %v431, 0.0026041667
        %v577 = vmul.f32 %v435, 0.0026041667
        %v578 = vmul.f32 %v439, 0.0026041667
        %v579 = vmul.f32 %v443, 0.0026041667
        %v580 = vmul.f32 %v447, 0.0026041667
        %v581 = vmul.f32 %v451, 0.0026041667
        %v582 = vmul.f32 %v455, 0.0026041667
        %v583 = vmul.f32 %v459, 0.0026041667
        %v584 = vmul.f32 %v463, 0.0026041667
        %v585 = vmul.f32 %v467, 0.0026041667
        %v586 = vmul.f32 %v471, 0.0026041667
        %v587 = vmul.f32 %v475, 0.0026041667
        %v588 = vmul.f32 %v479, 0.0026041667
        %v589 = vmul.f32 %v483, 0.0026041667
        %v590 = vmul.f32 %v487, 0.0026041667
        %v591 = vmul.f32 %v491, 0.0026041667
        %v592 = vmul.f32 %v495, 0.0026041667
        %v593 = vmul.f32 %v499, 0.0026041667
        %v594 = vmul.f32 %v503, 0.0026041667
        %v595 = vmul.f32 %v507, 0.0026041667
        %v596 = vmul.f32 %v511, 0.0026041667
        %v597 = vmul.f32 %v515, 0.0026041667
        %v598 = vmul.f32 %v519, 0.0026041667
        %v599 = vmul.f32 %v523, 0.0026041667
        %v600 = vmul.f32 %v527, 0.0026041667
        %v601 = vmul.f32 %v531, 0.0026041667
        %v602 = vmul.f32 %v535, 0.0026041667
        %v603 = vmul.f32 %v539, 0.0026041667
        %v604 = vmul.f32 %v543, 0.0026041667
        %v605 = vmul.f32 %v547, 0.0026041667
        %v606 = vmul.f32 %v551, 0.0026041667
        %v607 = vmul.f32 %v555, 0.0026041667
        %v608 = vmul.f32 %v559, 0.0026041667
        %v609 = vsub.f32 %v217, %v560
        %v610 = vsub.f32 %v218, %v560
        %v611 = vsub.f32 %v219, %v560
        %v612 = vsub.f32 %v220, %v561
        %v613 = vsub.f32 %v221, %v561
        %v614 = vsub.f32 %v222, %v561
        %v615 = vsub.f32 %v223, %v562
        %v616 = vsub.f32 %v224, %v562
        %v617 = vsub.f32 %v225, %v562
        %v618 = vsub.f32 %v226, %v563
        %v619 = vsub.f32 %v227, %v563
        %v620 = vsub.f32 %v228, %v563
        %v621 = vsub.f32 %v229, %v564
        %v622 = vsub.f32 %v230, %v564
        %v623 = vsub.f32 %v231, %v564
        %v624 = vsub.f32 %v232, %v565
        %v625 = vsub.f32 %v233, %v565
        %v626 = vsub.f32 %v234, %v565
        %v627 = vsub.f32 %v235, %v566
        %v628 = vsub.f32 %v236, %v566
        %v629 = vsub.f32 %v237, %v566
        %v630 = vsub.f32 %v238, %v567
        %v631 = vsub.f32 %v239, %v567
        %v632 = vsub.f32 %v240, %v567
        %v633 = vsub.f32 %v241, %v568
        %v634 = vsub.f32 %v242, %v568
        %v635 = vsub.f32 %v243, %v568
        %v636 = vsub.f32 %v244, %v569
        %v637 = vsub.f32 %v245, %v569
        %v638 = vsub.f32 %v246, %v569
        %v639 = vsub.f32 %v247, %v570
        %v640 = vsub.f32 %v248, %v570
        %v641 = vsub.f32 %v249, %v570
        %v642 = vsub.f32 %v250, %v571
        %v643 = vsub.f32 %v251, %v571
        %v644 = vsub.f32 %v252, %v571
        %v645 = vsub.f32 %v253, %v572
        %v646 = vsub.f32 %v254, %v572
        %v647 = vsub.f32 %v255, %v572
        %v648 = vsub.f32 %v256, %v573
        %v649 = vsub.f32 %v257, %v573
        %v650 = vsub.f32 %v258, %v573
        %v651 = vsub.f32 %v259, %v574
        %v652 = vsub.f32 %v260, %v574
        %v653 = vsub.f32 %v261, %v574
        %v654 = vsub.f32 %v262, %v575
        %v655 = vsub.f32 %v263, %v575
        %v656 = vsub.f32 %v264, %v575
        %v657 = vsub.f32 %v265, %v576
        %v658 = vsub.f32 %v266, %v576
        %v659 = vsub.f32 %v267, %v576
        %v660 = vsub.f32 %v268, %v577
        %v661 = vsub.f32 %v269, %v577
        %v662 = vsub.f32 %v270, %v577
        %v663 = vsub.f32 %v271, %v578
        %v664 = vsub.f32 %v272, %v578
        %v665 = vsub.f32 %v273, %v578
        %v666 = vsub.f32 %v274, %v579
        %v667 = vsub.f32 %v275, %v579
        %v668 = vsub.f32 %v276, %v579
        %v669 = vsub.f32 %v277, %v580
        %v670 = vsub.f32 %v278, %v580
        %v671 = vsub.f32 %v279, %v580
        %v672 = vsub.f32 %v280, %v581
        %v673 = vsub.f32 %v281, %v581
        %v674 = vsub.f32 %v282, %v581
        %v675 = vsub.f32 %v283, %v582
        %v676 = vsub.f32 %v284, %v582
        %v677 = vsub.f32 %v285, %v582
        %v678 = vsub.f32 %v286, %v583
        %v679 = vsub.f32 %v287, %v583
        %v680 = vsub.f32 %v288, %v583
        %v681 = vsub.f32 %v289, %v584
        %v682 = vsub.f32 %v290, %v584
        %v683 = vsub.f32 %v291, %v584
        %v684 = vsub.f32 %v292, %v585
        %v685 = vsub.f32 %v293, %v585
        %v686 = vsub.f32 %v294, %v585
        %v687 = vsub.f32 %v295, %v586
        %v688 = vsub.f32 %v296, %v586
        %v689 = vsub.f32 %v297, %v586
        %v690 = vsub.f32 %v298, %v587
        %v691 = vsub.f32 %v299, %v587
        %v692 = vsub.f32 %v300, %v587
        %v693 = vsub.f32 %v301, %v588
        %v694 = vsub.f32 %v302, %v588
        %v695 = vsub.f32 %v303, %v588
        %v696 = vsub.f32 %v304, %v589
        %v697 = vsub.f32 %v305, %v589
        %v698 = vsub.f32 %v306, %v589
        %v699 = vsub.f32 %v307, %v590
        %v700 = vsub.f32 %v308, %v590
        %v701 = vsub.f32 %v309, %v590
        %v702 = vsub.f32 %v310, %v591
        %v703 = vsub.f32 %v311, %v591
        %v704 = vsub.f32 %v312, %v591
        %v705 = vsub.f32 %v313, %v592
        %v706 = vsub.f32 %v314, %v592
        %v707 = vsub.f32 %v315, %v592
        %v708 = vsub.f32 %v316, %v593
        %v709 = vsub.f32 %v317, %v593
        %v710 = vsub.f32 %v318, %v593
        %v711 = vsub.f32 %v319, %v594
        %v712 = vsub.f32 %v320, %v594
        %v713 = vsub.f32 %v321, %v594
        %v714 = vsub.f32 %v322, %v595
        %v715 = vsub.f32 %v323, %v595
        %v716 = vsub.f32 %v324, %v595
        %v717 = vsub.f32 %v325, %v596
        %v718 = vsub.f32 %v326, %v596
        %v719 = vsub.f32 %v327, %v596
        %v720 = vsub.f32 %v328, %v597
        %v721 = vsub.f32 %v329, %v597
        %v722 = vsub.f32 %v330, %v597
        %v723 = vsub.f32 %v331, %v598
        %v724 = vsub.f32 %v332, %v598
        %v725 = vsub.f32 %v333, %v598
        %v726 = vsub.f32 %v334, %v599
        %v727 = vsub.f32 %v335, %v599
        %v728 = vsub.f32 %v336, %v599
        %v729 = vsub.f32 %v337, %v600
        %v730 = vsub.f32 %v338, %v600
        %v731 = vsub.f32 %v339, %v600
        %v732 = vsub.f32 %v340, %v601
        %v733 = vsub.f32 %v341, %v601
        %v734 = vsub.f32 %v342, %v601
        %v735 = vsub.f32 %v343, %v602
        %v736 = vsub.f32 %v344, %v602
        %v737 = vsub.f32 %v345, %v602
        %v738 = vsub.f32 %v346, %v603
        %v739 = vsub.f32 %v347, %v603
        %v740 = vsub.f32 %v348, %v603
        %v741 = vsub.f32 %v349, %v604
        %v742 = vsub.f32 %v350, %v604
        %v743 = vsub.f32 %v351, %v604
        %v744 = vsub.f32 %v352, %v605
        %v745 = vsub.f32 %v353, %v605
        %v746 = vsub.f32 %v354, %v605
        %v747 = vsub.f32 %v355, %v606
        %v748 = vsub.f32 %v356, %v606
        %v749 = vsub.f32 %v357, %v606
        %v750 = vsub.f32 %v358, %v607
        %v751 = vsub.f32 %v359, %v607
        %v752 = vsub.f32 %v360, %v607
        %v753 = vsub.f32 %v361, %v608
        %v754 = vsub.f32 %v362, %v608
        %v755 = vsub.f32 %v363, %v608
        %v756 = vmul.f32 %v609, %v609
        %v757 = vmul.f32 %v610, %v610
        %v758 = vmul.f32 %v611, %v611
        %v759 = vmul.f32 %v612, %v612
        %v760 = vmul.f32 %v613, %v613
        %v761 = vmul.f32 %v614, %v614
        %v762 = vmul.f32 %v615, %v615
        %v763 = vmul.f32 %v616, %v616
        %v764 = vmul.f32 %v617, %v617
        %v765 = vmul.f32 %v618, %v618
        %v766 = vmul.f32 %v619, %v619
        %v767 = vmul.f32 %v620, %v620
        %v768 = vmul.f32 %v621, %v621
        %v769 = vmul.f32 %v622, %v622
        %v770 = vmul.f32 %v623, %v623
        %v771 = vmul.f32 %v624, %v624
        %v772 = vmul.f32 %v625, %v625
        %v773 = vmul.f32 %v626, %v626
        %v774 = vmul.f32 %v627, %v627
        %v775 = vmul.f32 %v628, %v628
        %v776 = vmul.f32 %v629, %v629
        %v777 = vmul.f32 %v630, %v630
        %v778 = vmul.f32 %v631, %v631
        %v779 = vmul.f32 %v632, %v632
        %v780 = vmul.f32 %v633, %v633
        %v781 = vmul.f32 %v634, %v634
        %v782 = vmul.f32 %v635, %v635
        %v783 = vmul.f32 %v636, %v636
        %v784 = vmul.f32 %v637, %v637
        %v785 = vmul.f32 %v638, %v638
        %v786 = vmul.f32 %v639, %v639
        %v787 = vmul.f32 %v640, %v640
        %v788 = vmul.f32 %v641, %v641
        %v789 = vmul.f32 %v642, %v642
        %v790 = vmul.f32 %v643, %v643
        %v791 = vmul.f32 %v644, %v644
        %v792 = vmul.f32 %v645, %v645
        %v793 = vmul.f32 %v646, %v646
        %v794 = vmul.f32 %v647, %v647
        %v795 = vmul.f32 %v648, %v648
        %v796 = vmul.f32 %v649, %v649
        %v797 = vmul.f32 %v650, %v650
        %v798 = vmul.f32 %v651, %v651
        %v799 = vmul.f32 %v652, %v652
        %v800 = vmul.f32 %v653, %v653
        %v801 = vmul.f32 %v654, %v654
        %v802 = vmul.f32 %v655, %v655
        %v803 = vmul.f32 %v656, %v656
        %v804 = vmul.f32 %v657, %v657
        %v805 = vmul.f32 %v658, %v658
        %v806 = vmul.f32 %v659, %v659
        %v807 = vmul.f32 %v660, %v660
        %v808 = vmul.f32 %v661, %v661
        %v809 = vmul.f32 %v662, %v662
        %v810 = vmul.f32 %v663, %v663
        %v811 = vmul.f32 %v664, %v664
        %v812 = vmul.f32 %v665, %v665
        %v813 = vmul.f32 %v666, %v666
        %v814 = vmul.f32 %v667, %v667
        %v815 = vmul.f32 %v668, %v668
        %v816 = vmul.f32 %v669, %v669
        %v817 = vmul.f32 %v670, %v670
        %v818 = vmul.f32 %v671, %v671
        %v819 = vmul.f32 %v672, %v672
        %v820 = vmul.f32 %v673, %v673
        %v821 = vmul.f32 %v674, %v674
        %v822 = vmul.f32 %v675, %v675
        %v823 = vmul.f32 %v676, %v676
        %v824 = vmul.f32 %v677, %v677
        %v825 = vmul.f32 %v678, %v678
        %v826 = vmul.f32 %v679, %v679
        %v827 = vmul.f32 %v680, %v680
        %v828 = vmul.f32 %v681, %v681
        %v829 = vmul.f32 %v682, %v682
        %v830 = vmul.f32 %v683, %v683
        %v831 = vmul.f32 %v684, %v684
        %v832 = vmul.f32 %v685, %v685
        %v833 = vmul.f32 %v686, %v686
        %v834 = vmul.f32 %v687, %v687
        %v835 = vmul.f32 %v688, %v688
        %v836 = vmul.f32 %v689, %v689
        %v837 = vmul.f32 %v690, %v690
        %v838 = vmul.f32 %v691, %v691
        %v839 = vmul.f32 %v692, %v692
        %v840 = vmul.f32 %v693, %v693
        %v841 = vmul.f32 %v694, %v694
        %v842 = vmul.f32 %v695, %v695
        %v843 = vmul.f32 %v696, %v696
        %v844 = vmul.f32 %v697, %v697
        %v845 = vmul.f32 %v698, %v698
        %v846 = vmul.f32 %v699, %v699
        %v847 = vmul.f32 %v700, %v700
        %v848 = vmul.f32 %v701, %v701
        %v849 = vmul.f32 %v702, %v702
        %v850 = vmul.f32 %v703, %v703
        %v851 = vmul.f32 %v704, %v704
        %v852 = vmul.f32 %v705, %v705
        %v853 = vmul.f32 %v706, %v706
        %v854 = vmul.f32 %v707, %v707
        %v855 = vmul.f32 %v708, %v708
        %v856 = vmul.f32 %v709, %v709
        %v857 = vmul.f32 %v710, %v710
        %v858 = vmul.f32 %v711, %v711
        %v859 = vmul.f32 %v712, %v712
        %v860 = vmul.f32 %v713, %v713
        %v861 = vmul.f32 %v714, %v714
        %v862 = vmul.f32 %v715, %v715
        %v863 = vmul.f32 %v716, %v716
        %v864 = vmul.f32 %v717, %v717
        %v865 = vmul.f32 %v718, %v718
        %v866 = vmul.f32 %v719, %v719
        %v867 = vmul.f32 %v720, %v720
        %v868 = vmul.f32 %v721, %v721
        %v869 = vmul.f32 %v722, %v722
        %v870 = vmul.f32 %v723, %v723
        %v871 = vmul.f32 %v724, %v724
        %v872 = vmul.f32 %v725, %v725
        %v873 = vmul.f32 %v726, %v726
        %v874 = vmul.f32 %v727, %v727
        %v875 = vmul.f32 %v728, %v728
        %v876 = vmul.f32 %v729, %v729
        %v877 = vmul.f32 %v730, %v730
        %v878 = vmul.f32 %v731, %v731
        %v879 = vmul.f32 %v732, %v732
        %v880 = vmul.f32 %v733, %v733
        %v881 = vmul.f32 %v734, %v734
        %v882 = vmul.f32 %v735, %v735
        %v883 = vmul.f32 %v736, %v736
        %v884 = vmul.f32 %v737, %v737
        %v885 = vmul.f32 %v738, %v738
        %v886 = vmul.f32 %v739, %v739
        %v887 = vmul.f32 %v740, %v740
        %v888 = vmul.f32 %v741, %v741
        %v889 = vmul.f32 %v742, %v742
        %v890 = vmul.f32 %v743, %v743
        %v891 = vmul.f32 %v744, %v744
        %v892 = vmul.f32 %v745, %v745
        %v893 = vmul.f32 %v746, %v746
        %v894 = vmul.f32 %v747, %v747
        %v895 = vmul.f32 %v748, %v748
        %v896 = vmul.f32 %v749, %v749
        %v897 = vmul.f32 %v750, %v750
        %v898 = vmul.f32 %v751, %v751
        %v899 = vmul.f32 %v752, %v752
        %v900 = vmul.f32 %v753, %v753
        %v901 = vmul.f32 %v754, %v754
        %v902 = vmul.f32 %v755, %v755
        %v903 = vadd.f32 %v756, %v757
        %v904 = vadd.f32 %v903, %v758
        %905 = vadd.xlane.f32.xlu0 %v904
        %v906 = vpop.xlane.xlu0 %905
        %v907 = vadd.f32 %v759, %v760
        %v908 = vadd.f32 %v907, %v761
        %909 = vadd.xlane.f32.xlu0 %v908
        %v910 = vpop.xlane.xlu0 %909
        %v911 = vadd.f32 %v762, %v763
        %v912 = vadd.f32 %v911, %v764
        %913 = vadd.xlane.f32.xlu0 %v912
        %v914 = vpop.xlane.xlu0 %913
        %v915 = vadd.f32 %v765, %v766
        %v916 = vadd.f32 %v915, %v767
        %917 = vadd.xlane.f32.xlu0 %v916
        %v918 = vpop.xlane.xlu0 %917
        %v919 = vadd.f32 %v768, %v769
        %v920 = vadd.f32 %v919, %v770
        %921 = vadd.xlane.f32.xlu0 %v920
        %v922 = vpop.xlane.xlu0 %921
        %v923 = vadd.f32 %v771, %v772
        %v924 = vadd.f32 %v923, %v773
        %925 = vadd.xlane.f32.xlu0 %v924
        %v926 = vpop.xlane.xlu0 %925
        %v927 = vadd.f32 %v774, %v775
        %v928 = vadd.f32 %v927, %v776
        %929 = vadd.xlane.f32.xlu0 %v928
        %v930 = vpop.xlane.xlu0 %929
        %v931 = vadd.f32 %v777, %v778
        %v932 = vadd.f32 %v931, %v779
        %933 = vadd.xlane.f32.xlu0 %v932
        %v934 = vpop.xlane.xlu0 %933
        %v935 = vadd.f32 %v780, %v781
        %v936 = vadd.f32 %v935, %v782
        %937 = vadd.xlane.f32.xlu0 %v936
        %v938 = vpop.xlane.xlu0 %937
        %v939 = vadd.f32 %v783, %v784
        %v940 = vadd.f32 %v939, %v785
        %941 = vadd.xlane.f32.xlu0 %v940
        %v942 = vpop.xlane.xlu0 %941
        %v943 = vadd.f32 %v786, %v787
        %v944 = vadd.f32 %v943, %v788
        %945 = vadd.xlane.f32.xlu0 %v944
        %v946 = vpop.xlane.xlu0 %945
        %v947 = vadd.f32 %v789, %v790
        %v948 = vadd.f32 %v947, %v791
        %949 = vadd.xlane.f32.xlu0 %v948
        %v950 = vpop.xlane.xlu0 %949
        %v951 = vadd.f32 %v792, %v793
        %v952 = vadd.f32 %v951, %v794
        %953 = vadd.xlane.f32.xlu0 %v952
        %v954 = vpop.xlane.xlu0 %953
        %v955 = vadd.f32 %v795, %v796
        %v956 = vadd.f32 %v955, %v797
        %957 = vadd.xlane.f32.xlu0 %v956
        %v958 = vpop.xlane.xlu0 %957
        %v959 = vadd.f32 %v798, %v799
        %v960 = vadd.f32 %v959, %v800
        %961 = vadd.xlane.f32.xlu0 %v960
        %v962 = vpop.xlane.xlu0 %961
        %v963 = vadd.f32 %v801, %v802
        %v964 = vadd.f32 %v963, %v803
        %965 = vadd.xlane.f32.xlu0 %v964
        %v966 = vpop.xlane.xlu0 %965
        %v967 = vadd.f32 %v804, %v805
        %v968 = vadd.f32 %v967, %v806
        %969 = vadd.xlane.f32.xlu0 %v968
        %v970 = vpop.xlane.xlu0 %969
        %v971 = vadd.f32 %v807, %v808
        %v972 = vadd.f32 %v971, %v809
        %973 = vadd.xlane.f32.xlu0 %v972
        %v974 = vpop.xlane.xlu0 %973
        %v975 = vadd.f32 %v810, %v811
        %v976 = vadd.f32 %v975, %v812
        %977 = vadd.xlane.f32.xlu0 %v976
        %v978 = vpop.xlane.xlu0 %977
        %v979 = vadd.f32 %v813, %v814
        %v980 = vadd.f32 %v979, %v815
        %981 = vadd.xlane.f32.xlu0 %v980
        %v982 = vpop.xlane.xlu0 %981
        %v983 = vadd.f32 %v816, %v817
        %v984 = vadd.f32 %v983, %v818
        %985 = vadd.xlane.f32.xlu0 %v984
        %v986 = vpop.xlane.xlu0 %985
        %v987 = vadd.f32 %v819, %v820
        %v988 = vadd.f32 %v987, %v821
        %989 = vadd.xlane.f32.xlu0 %v988
        %v990 = vpop.xlane.xlu0 %989
        %v991 = vadd.f32 %v822, %v823
        %v992 = vadd.f32 %v991, %v824
        %993 = vadd.xlane.f32.xlu0 %v992
        %v994 = vpop.xlane.xlu0 %993
        %v995 = vadd.f32 %v825, %v826
        %v996 = vadd.f32 %v995, %v827
        %997 = vadd.xlane.f32.xlu0 %v996
        %v998 = vpop.xlane.xlu0 %997
        %v999 = vadd.f32 %v828, %v829
        %v1000 = vadd.f32 %v999, %v830
        %1001 = vadd.xlane.f32.xlu0 %v1000
        %v1002 = vpop.xlane.xlu0 %1001
        %v1003 = vadd.f32 %v831, %v832
        %v1004 = vadd.f32 %v1003, %v833
        %1005 = vadd.xlane.f32.xlu0 %v1004
        %v1006 = vpop.xlane.xlu0 %1005
        %v1007 = vadd.f32 %v834, %v835
        %v1008 = vadd.f32 %v1007, %v836
        %1009 = vadd.xlane.f32.xlu0 %v1008
        %v1010 = vpop.xlane.xlu0 %1009
        %v1011 = vadd.f32 %v837, %v838
        %v1012 = vadd.f32 %v1011, %v839
        %1013 = vadd.xlane.f32.xlu0 %v1012
        %v1014 = vpop.xlane.xlu0 %1013
        %v1015 = vadd.f32 %v840, %v841
        %v1016 = vadd.f32 %v1015, %v842
        %1017 = vadd.xlane.f32.xlu0 %v1016
        %v1018 = vpop.xlane.xlu0 %1017
        %v1019 = vadd.f32 %v843, %v844
        %v1020 = vadd.f32 %v1019, %v845
        %1021 = vadd.xlane.f32.xlu0 %v1020
        %v1022 = vpop.xlane.xlu0 %1021
        %v1023 = vadd.f32 %v846, %v847
        %v1024 = vadd.f32 %v1023, %v848
        %1025 = vadd.xlane.f32.xlu0 %v1024
        %v1026 = vpop.xlane.xlu0 %1025
        %v1027 = vadd.f32 %v849, %v850
        %v1028 = vadd.f32 %v1027, %v851
        %1029 = vadd.xlane.f32.xlu0 %v1028
        %v1030 = vpop.xlane.xlu0 %1029
        %v1031 = vadd.f32 %v852, %v853
        %v1032 = vadd.f32 %v1031, %v854
        %1033 = vadd.xlane.f32.xlu0 %v1032
        %v1034 = vpop.xlane.xlu0 %1033
        %v1035 = vadd.f32 %v855, %v856
        %v1036 = vadd.f32 %v1035, %v857
        %1037 = vadd.xlane.f32.xlu0 %v1036
        %v1038 = vpop.xlane.xlu0 %1037
        %v1039 = vadd.f32 %v858, %v859
        %v1040 = vadd.f32 %v1039, %v860
        %1041 = vadd.xlane.f32.xlu0 %v1040
        %v1042 = vpop.xlane.xlu0 %1041
        %v1043 = vadd.f32 %v861, %v862
        %v1044 = vadd.f32 %v1043, %v863
        %1045 = vadd.xlane.f32.xlu0 %v1044
        %v1046 = vpop.xlane.xlu0 %1045
        %v1047 = vadd.f32 %v864, %v865
        %v1048 = vadd.f32 %v1047, %v866
        %1049 = vadd.xlane.f32.xlu0 %v1048
        %v1050 = vpop.xlane.xlu0 %1049
        %v1051 = vadd.f32 %v867, %v868
        %v1052 = vadd.f32 %v1051, %v869
        %1053 = vadd.xlane.f32.xlu0 %v1052
        %v1054 = vpop.xlane.xlu0 %1053
        %v1055 = vadd.f32 %v870, %v871
        %v1056 = vadd.f32 %v1055, %v872
        %1057 = vadd.xlane.f32.xlu0 %v1056
        %v1058 = vpop.xlane.xlu0 %1057
        %v1059 = vadd.f32 %v873, %v874
        %v1060 = vadd.f32 %v1059, %v875
        %1061 = vadd.xlane.f32.xlu0 %v1060
        %v1062 = vpop.xlane.xlu0 %1061
        %v1063 = vadd.f32 %v876, %v877
        %v1064 = vadd.f32 %v1063, %v878
        %1065 = vadd.xlane.f32.xlu0 %v1064
        %v1066 = vpop.xlane.xlu0 %1065
        %v1067 = vadd.f32 %v879, %v880
        %v1068 = vadd.f32 %v1067, %v881
        %1069 = vadd.xlane.f32.xlu0 %v1068
        %v1070 = vpop.xlane.xlu0 %1069
        %v1071 = vadd.f32 %v882, %v883
        %v1072 = vadd.f32 %v1071, %v884
        %1073 = vadd.xlane.f32.xlu0 %v1072
        %v1074 = vpop.xlane.xlu0 %1073
        %v1075 = vadd.f32 %v885, %v886
        %v1076 = vadd.f32 %v1075, %v887
        %1077 = vadd.xlane.f32.xlu0 %v1076
        %v1078 = vpop.xlane.xlu0 %1077
        %v1079 = vadd.f32 %v888, %v889
        %v1080 = vadd.f32 %v1079, %v890
        %1081 = vadd.xlane.f32.xlu0 %v1080
        %v1082 = vpop.xlane.xlu0 %1081
        %v1083 = vadd.f32 %v891, %v892
        %v1084 = vadd.f32 %v1083, %v893
        %1085 = vadd.xlane.f32.xlu0 %v1084
        %v1086 = vpop.xlane.xlu0 %1085
        %v1087 = vadd.f32 %v894, %v895
        %v1088 = vadd.f32 %v1087, %v896
        %1089 = vadd.xlane.f32.xlu0 %v1088
        %v1090 = vpop.xlane.xlu0 %1089
        %v1091 = vadd.f32 %v897, %v898
        %v1092 = vadd.f32 %v1091, %v899
        %1093 = vadd.xlane.f32.xlu0 %v1092
        %v1094 = vpop.xlane.xlu0 %1093
        %v1095 = vadd.f32 %v900, %v901
        %v1096 = vadd.f32 %v1095, %v902
        %1097 = vadd.xlane.f32.xlu0 %v1096
        %v1098 = vpop.xlane.xlu0 %1097
        %v1099 = vmul.f32 %v906, 0.0026041667
        %v1100 = vmul.f32 %v910, 0.0026041667
        %v1101 = vmul.f32 %v914, 0.0026041667
        %v1102 = vmul.f32 %v918, 0.0026041667
        %v1103 = vmul.f32 %v922, 0.0026041667
        %v1104 = vmul.f32 %v926, 0.0026041667
        %v1105 = vmul.f32 %v930, 0.0026041667
        %v1106 = vmul.f32 %v934, 0.0026041667
        %v1107 = vmul.f32 %v938, 0.0026041667
        %v1108 = vmul.f32 %v942, 0.0026041667
        %v1109 = vmul.f32 %v946, 0.0026041667
        %v1110 = vmul.f32 %v950, 0.0026041667
        %v1111 = vmul.f32 %v954, 0.0026041667
        %v1112 = vmul.f32 %v958, 0.0026041667
        %v1113 = vmul.f32 %v962, 0.0026041667
        %v1114 = vmul.f32 %v966, 0.0026041667
        %v1115 = vmul.f32 %v970, 0.0026041667
        %v1116 = vmul.f32 %v974, 0.0026041667
        %v1117 = vmul.f32 %v978, 0.0026041667
        %v1118 = vmul.f32 %v982, 0.0026041667
        %v1119 = vmul.f32 %v986, 0.0026041667
        %v1120 = vmul.f32 %v990, 0.0026041667
        %v1121 = vmul.f32 %v994, 0.0026041667
        %v1122 = vmul.f32 %v998, 0.0026041667
        %v1123 = vmul.f32 %v1002, 0.0026041667
        %v1124 = vmul.f32 %v1006, 0.0026041667
        %v1125 = vmul.f32 %v1010, 0.0026041667
        %v1126 = vmul.f32 %v1014, 0.0026041667
        %v1127 = vmul.f32 %v1018, 0.0026041667
        %v1128 = vmul.f32 %v1022, 0.0026041667
        %v1129 = vmul.f32 %v1026, 0.0026041667
        %v1130 = vmul.f32 %v1030, 0.0026041667
        %v1131 = vmul.f32 %v1034, 0.0026041667
        %v1132 = vmul.f32 %v1038, 0.0026041667
        %v1133 = vmul.f32 %v1042, 0.0026041667
        %v1134 = vmul.f32 %v1046, 0.0026041667
        %v1135 = vmul.f32 %v1050, 0.0026041667
        %v1136 = vmul.f32 %v1054, 0.0026041667
        %v1137 = vmul.f32 %v1058, 0.0026041667
        %v1138 = vmul.f32 %v1062, 0.0026041667
        %v1139 = vmul.f32 %v1066, 0.0026041667
        %v1140 = vmul.f32 %v1070, 0.0026041667
        %v1141 = vmul.f32 %v1074, 0.0026041667
        %v1142 = vmul.f32 %v1078, 0.0026041667
        %v1143 = vmul.f32 %v1082, 0.0026041667
        %v1144 = vmul.f32 %v1086, 0.0026041667
        %v1145 = vmul.f32 %v1090, 0.0026041667
        %v1146 = vmul.f32 %v1094, 0.0026041667
        %v1147 = vmul.f32 %v1098, 0.0026041667
        %v1148 = vadd.f32 %v1099, 1e-05
        %v1149 = vadd.f32 %v1100, 1e-05
        %v1150 = vadd.f32 %v1101, 1e-05
        %v1151 = vadd.f32 %v1102, 1e-05
        %v1152 = vadd.f32 %v1103, 1e-05
        %v1153 = vadd.f32 %v1104, 1e-05
        %v1154 = vadd.f32 %v1105, 1e-05
        %v1155 = vadd.f32 %v1106, 1e-05
        %v1156 = vadd.f32 %v1107, 1e-05
        %v1157 = vadd.f32 %v1108, 1e-05
        %v1158 = vadd.f32 %v1109, 1e-05
        %v1159 = vadd.f32 %v1110, 1e-05
        %v1160 = vadd.f32 %v1111, 1e-05
        %v1161 = vadd.f32 %v1112, 1e-05
        %v1162 = vadd.f32 %v1113, 1e-05
        %v1163 = vadd.f32 %v1114, 1e-05
        %v1164 = vadd.f32 %v1115, 1e-05
        %v1165 = vadd.f32 %v1116, 1e-05
        %v1166 = vadd.f32 %v1117, 1e-05
        %v1167 = vadd.f32 %v1118, 1e-05
        %v1168 = vadd.f32 %v1119, 1e-05
        %v1169 = vadd.f32 %v1120, 1e-05
        %v1170 = vadd.f32 %v1121, 1e-05
        %v1171 = vadd.f32 %v1122, 1e-05
        %v1172 = vadd.f32 %v1123, 1e-05
        %v1173 = vadd.f32 %v1124, 1e-05
        %v1174 = vadd.f32 %v1125, 1e-05
        %v1175 = vadd.f32 %v1126, 1e-05
        %v1176 = vadd.f32 %v1127, 1e-05
        %v1177 = vadd.f32 %v1128, 1e-05
        %v1178 = vadd.f32 %v1129, 1e-05
        %v1179 = vadd.f32 %v1130, 1e-05
        %v1180 = vadd.f32 %v1131, 1e-05
        %v1181 = vadd.f32 %v1132, 1e-05
        %v1182 = vadd.f32 %v1133, 1e-05
        %v1183 = vadd.f32 %v1134, 1e-05
        %v1184 = vadd.f32 %v1135, 1e-05
        %v1185 = vadd.f32 %v1136, 1e-05
        %v1186 = vadd.f32 %v1137, 1e-05
        %v1187 = vadd.f32 %v1138, 1e-05
        %v1188 = vadd.f32 %v1139, 1e-05
        %v1189 = vadd.f32 %v1140, 1e-05
        %v1190 = vadd.f32 %v1141, 1e-05
        %v1191 = vadd.f32 %v1142, 1e-05
        %v1192 = vadd.f32 %v1143, 1e-05
        %v1193 = vadd.f32 %v1144, 1e-05
        %v1194 = vadd.f32 %v1145, 1e-05
        %v1195 = vadd.f32 %v1146, 1e-05
        %v1196 = vadd.f32 %v1147, 1e-05
        %v1197 = vrsqrt.pop %v1148
        %v1198 = vrsqrt.pop %v1149
        %v1199 = vrsqrt.pop %v1150
        %v1200 = vrsqrt.pop %v1151
        %v1201 = vrsqrt.pop %v1152
        %v1202 = vrsqrt.pop %v1153
        %v1203 = vrsqrt.pop %v1154
        %v1204 = vrsqrt.pop %v1155
        %v1205 = vrsqrt.pop %v1156
        %v1206 = vrsqrt.pop %v1157
        %v1207 = vrsqrt.pop %v1158
        %v1208 = vrsqrt.pop %v1159
        %v1209 = vrsqrt.pop %v1160
        %v1210 = vrsqrt.pop %v1161
        %v1211 = vrsqrt.pop %v1162
        %v1212 = vrsqrt.pop %v1163
        %v1213 = vrsqrt.pop %v1164
        %v1214 = vrsqrt.pop %v1165
        %v1215 = vrsqrt.pop %v1166
        %v1216 = vrsqrt.pop %v1167
        %v1217 = vrsqrt.pop %v1168
        %v1218 = vrsqrt.pop %v1169
        %v1219 = vrsqrt.pop %v1170
        %v1220 = vrsqrt.pop %v1171
        %v1221 = vrsqrt.pop %v1172
        %v1222 = vrsqrt.pop %v1173
        %v1223 = vrsqrt.pop %v1174
        %v1224 = vrsqrt.pop %v1175
        %v1225 = vrsqrt.pop %v1176
        %v1226 = vrsqrt.pop %v1177
        %v1227 = vrsqrt.pop %v1178
        %v1228 = vrsqrt.pop %v1179
        %v1229 = vrsqrt.pop %v1180
        %v1230 = vrsqrt.pop %v1181
        %v1231 = vrsqrt.pop %v1182
        %v1232 = vrsqrt.pop %v1183
        %v1233 = vrsqrt.pop %v1184
        %v1234 = vrsqrt.pop %v1185
        %v1235 = vrsqrt.pop %v1186
        %v1236 = vrsqrt.pop %v1187
        %v1237 = vrsqrt.pop %v1188
        %v1238 = vrsqrt.pop %v1189
        %v1239 = vrsqrt.pop %v1190
        %v1240 = vrsqrt.pop %v1191
        %v1241 = vrsqrt.pop %v1192
        %v1242 = vrsqrt.pop %v1193
        %v1243 = vrsqrt.pop %v1194
        %v1244 = vrsqrt.pop %v1195
        %v1245 = vrsqrt.pop %v1196
        %v1246 = vld [vmem:[#allocation5] sm:$0x7]
        %v1247 = vld [vmem:[#allocation7] sm:$0x7]
        %v1249 = vlaneseq
        %v1250 = vshrl.u32 %v1249, 7
        %v1251 = vsub.s32 0, %v1250
        %v1252 = vrot.slane %v1246, %v1251
        %v1253 = vlaneseq
        %v1254 = vshrl.u32 %v1253, 7
        %v1255 = vsub.s32 1, %v1254
        %v1256 = vrot.slane %v1246, %v1255
        %v1257 = vlaneseq
        %v1258 = vshrl.u32 %v1257, 7
        %v1259 = vsub.s32 2, %v1258
        %v1260 = vrot.slane %v1246, %v1259
        %v1264 = vmul.f32 %v1197, %v1252
        %v1265 = vmul.f32 %v1197, %v1256
        %v1266 = vmul.f32 %v1197, %v1260
        %v1267 = vmul.f32 %v1198, %v1252
        %v1268 = vmul.f32 %v1198, %v1256
        %v1269 = vmul.f32 %v1198, %v1260
        %v1270 = vmul.f32 %v1199, %v1252
        %v1271 = vmul.f32 %v1199, %v1256
        %v1272 = vmul.f32 %v1199, %v1260
        %v1273 = vmul.f32 %v1200, %v1252
        %v1274 = vmul.f32 %v1200, %v1256
        %v1275 = vmul.f32 %v1200, %v1260
        %v1276 = vmul.f32 %v1201, %v1252
        %v1277 = vmul.f32 %v1201, %v1256
        %v1278 = vmul.f32 %v1201, %v1260
        %v1279 = vmul.f32 %v1202, %v1252
        %v1280 = vmul.f32 %v1202, %v1256
        %v1281 = vmul.f32 %v1202, %v1260
        %v1282 = vmul.f32 %v1203, %v1252
        %v1283 = vmul.f32 %v1203, %v1256
        %v1284 = vmul.f32 %v1203, %v1260
        %v1285 = vmul.f32 %v1204, %v1252
        %v1286 = vmul.f32 %v1204, %v1256
        %v1287 = vmul.f32 %v1204, %v1260
        %v1288 = vmul.f32 %v1205, %v1252
        %v1289 = vmul.f32 %v1205, %v1256
        %v1290 = vmul.f32 %v1205, %v1260
        %v1291 = vmul.f32 %v1206, %v1252
        %v1292 = vmul.f32 %v1206, %v1256
        %v1293 = vmul.f32 %v1206, %v1260
        %v1294 = vmul.f32 %v1207, %v1252
        %v1295 = vmul.f32 %v1207, %v1256
        %v1296 = vmul.f32 %v1207, %v1260
        %v1297 = vmul.f32 %v1208, %v1252
        %v1298 = vmul.f32 %v1208, %v1256
        %v1299 = vmul.f32 %v1208, %v1260
        %v1300 = vmul.f32 %v1209, %v1252
        %v1301 = vmul.f32 %v1209, %v1256
        %v1302 = vmul.f32 %v1209, %v1260
        %v1303 = vmul.f32 %v1210, %v1252
        %v1304 = vmul.f32 %v1210, %v1256
        %v1305 = vmul.f32 %v1210, %v1260
        %v1306 = vmul.f32 %v1211, %v1252
        %v1307 = vmul.f32 %v1211, %v1256
        %v1308 = vmul.f32 %v1211, %v1260
        %v1309 = vmul.f32 %v1212, %v1252
        %v1310 = vmul.f32 %v1212, %v1256
        %v1311 = vmul.f32 %v1212, %v1260
        %v1312 = vmul.f32 %v1213, %v1252
        %v1313 = vmul.f32 %v1213, %v1256
        %v1314 = vmul.f32 %v1213, %v1260
        %v1315 = vmul.f32 %v1214, %v1252
        %v1316 = vmul.f32 %v1214, %v1256
        %v1317 = vmul.f32 %v1214, %v1260
        %v1318 = vmul.f32 %v1215, %v1252
        %v1319 = vmul.f32 %v1215, %v1256
        %v1320 = vmul.f32 %v1215, %v1260
        %v1321 = vmul.f32 %v1216, %v1252
        %v1322 = vmul.f32 %v1216, %v1256
        %v1323 = vmul.f32 %v1216, %v1260
        %v1324 = vmul.f32 %v1217, %v1252
        %v1325 = vmul.f32 %v1217, %v1256
        %v1326 = vmul.f32 %v1217, %v1260
        %v1327 = vmul.f32 %v1218, %v1252
        %v1328 = vmul.f32 %v1218, %v1256
        %v1329 = vmul.f32 %v1218, %v1260
        %v1330 = vmul.f32 %v1219, %v1252
        %v1331 = vmul.f32 %v1219, %v1256
        %v1332 = vmul.f32 %v1219, %v1260
        %v1333 = vmul.f32 %v1220, %v1252
        %v1334 = vmul.f32 %v1220, %v1256
        %v1335 = vmul.f32 %v1220, %v1260
        %v1336 = vmul.f32 %v1221, %v1252
        %v1337 = vmul.f32 %v1221, %v1256
        %v1338 = vmul.f32 %v1221, %v1260
        %v1339 = vmul.f32 %v1222, %v1252
        %v1340 = vmul.f32 %v1222, %v1256
        %v1341 = vmul.f32 %v1222, %v1260
        %v1342 = vmul.f32 %v1223, %v1252
        %v1343 = vmul.f32 %v1223, %v1256
        %v1344 = vmul.f32 %v1223, %v1260
        %v1345 = vmul.f32 %v1224, %v1252
        %v1346 = vmul.f32 %v1224, %v1256
        %v1347 = vmul.f32 %v1224, %v1260
        %v1348 = vmul.f32 %v1225, %v1252
        %v1349 = vmul.f32 %v1225, %v1256
        %v1350 = vmul.f32 %v1225, %v1260
        %v1351 = vmul.f32 %v1226, %v1252
        %v1352 = vmul.f32 %v1226, %v1256
        %v1353 = vmul.f32 %v1226, %v1260
        %v1354 = vmul.f32 %v1227, %v1252
        %v1355 = vmul.f32 %v1227, %v1256
        %v1356 = vmul.f32 %v1227, %v1260
        %v1357 = vmul.f32 %v1228, %v1252
        %v1358 = vmul.f32 %v1228, %v1256
        %v1359 = vmul.f32 %v1228, %v1260
        %v1360 = vmul.f32 %v1229, %v1252
        %v1361 = vmul.f32 %v1229, %v1256
        %v1362 = vmul.f32 %v1229, %v1260
        %v1363 = vmul.f32 %v1230, %v1252
        %v1364 = vmul.f32 %v1230, %v1256
        %v1365 = vmul.f32 %v1230, %v1260
        %v1366 = vmul.f32 %v1231, %v1252
        %v1367 = vmul.f32 %v1231, %v1256
        %v1368 = vmul.f32 %v1231, %v1260
        %v1369 = vmul.f32 %v1232, %v1252
        %v1370 = vmul.f32 %v1232, %v1256
        %v1371 = vmul.f32 %v1232, %v1260
        %v1372 = vmul.f32 %v1233, %v1252
        %v1373 = vmul.f32 %v1233, %v1256
        %v1374 = vmul.f32 %v1233, %v1260
        %v1375 = vmul.f32 %v1234, %v1252
        %v1376 = vmul.f32 %v1234, %v1256
        %v1377 = vmul.f32 %v1234, %v1260
        %v1378 = vmul.f32 %v1235, %v1252
        %v1379 = vmul.f32 %v1235, %v1256
        %v1380 = vmul.f32 %v1235, %v1260
        %v1381 = vmul.f32 %v1236, %v1252
        %v1382 = vmul.f32 %v1236, %v1256
        %v1383 = vmul.f32 %v1236, %v1260
        %v1384 = vmul.f32 %v1237, %v1252
        %v1385 = vmul.f32 %v1237, %v1256
        %v1386 = vmul.f32 %v1237, %v1260
        %v1387 = vmul.f32 %v1238, %v1252
        %v1388 = vmul.f32 %v1238, %v1256
        %v1389 = vmul.f32 %v1238, %v1260
        %v1390 = vmul.f32 %v1239, %v1252
        %v1391 = vmul.f32 %v1239, %v1256
        %v1392 = vmul.f32 %v1239, %v1260
        %v1393 = vmul.f32 %v1240, %v1252
        %v1394 = vmul.f32 %v1240, %v1256
        %v1395 = vmul.f32 %v1240, %v1260
        %v1396 = vmul.f32 %v1241, %v1252
        %v1397 = vmul.f32 %v1241, %v1256
        %v1398 = vmul.f32 %v1241, %v1260
        %v1399 = vmul.f32 %v1242, %v1252
        %v1400 = vmul.f32 %v1242, %v1256
        %v1401 = vmul.f32 %v1242, %v1260
        %v1402 = vmul.f32 %v1243, %v1252
        %v1403 = vmul.f32 %v1243, %v1256
        %v1404 = vmul.f32 %v1243, %v1260
        %v1405 = vmul.f32 %v1244, %v1252
        %v1406 = vmul.f32 %v1244, %v1256
        %v1407 = vmul.f32 %v1244, %v1260
        %v1408 = vmul.f32 %v1245, %v1252
        %v1409 = vmul.f32 %v1245, %v1256
        %v1410 = vmul.f32 %v1245, %v1260
        %v1411 = vmul.f32 %v609, %v1264
        %v1412 = vmul.f32 %v610, %v1265
        %v1413 = vmul.f32 %v611, %v1266
        %v1414 = vmul.f32 %v612, %v1267
        %v1415 = vmul.f32 %v613, %v1268
        %v1416 = vmul.f32 %v614, %v1269
        %v1417 = vmul.f32 %v615, %v1270
        %v1418 = vmul.f32 %v616, %v1271
        %v1419 = vmul.f32 %v617, %v1272
        %v1420 = vmul.f32 %v618, %v1273
        %v1421 = vmul.f32 %v619, %v1274
        %v1422 = vmul.f32 %v620, %v1275
        %v1423 = vmul.f32 %v621, %v1276
        %v1424 = vmul.f32 %v622, %v1277
        %v1425 = vmul.f32 %v623, %v1278
        %v1426 = vmul.f32 %v624, %v1279
        %v1427 = vmul.f32 %v625, %v1280
        %v1428 = vmul.f32 %v626, %v1281
        %v1429 = vmul.f32 %v627, %v1282
        %v1430 = vmul.f32 %v628, %v1283
        %v1431 = vmul.f32 %v629, %v1284
        %v1432 = vmul.f32 %v630, %v1285
        %v1433 = vmul.f32 %v631, %v1286
        %v1434 = vmul.f32 %v632, %v1287
        %v1435 = vmul.f32 %v633, %v1288
        %v1436 = vmul.f32 %v634, %v1289
        %v1437 = vmul.f32 %v635, %v1290
        %v1438 = vmul.f32 %v636, %v1291
        %v1439 = vmul.f32 %v637, %v1292
        %v1440 = vmul.f32 %v638, %v1293
        %v1441 = vmul.f32 %v639, %v1294
        %v1442 = vmul.f32 %v640, %v1295
        %v1443 = vmul.f32 %v641, %v1296
        %v1444 = vmul.f32 %v642, %v1297
        %v1445 = vmul.f32 %v643, %v1298
        %v1446 = vmul.f32 %v644, %v1299
        %v1447 = vmul.f32 %v645, %v1300
        %v1448 = vmul.f32 %v646, %v1301
        %v1449 = vmul.f32 %v647, %v1302
        %v1450 = vmul.f32 %v648, %v1303
        %v1451 = vmul.f32 %v649, %v1304
        %v1452 = vmul.f32 %v650, %v1305
        %v1453 = vmul.f32 %v651, %v1306
        %v1454 = vmul.f32 %v652, %v1307
        %v1455 = vmul.f32 %v653, %v1308
        %v1456 = vmul.f32 %v654, %v1309
        %v1457 = vmul.f32 %v655, %v1310
        %v1458 = vmul.f32 %v656, %v1311
        %v1459 = vmul.f32 %v657, %v1312
        %v1460 = vmul.f32 %v658, %v1313
        %v1461 = vmul.f32 %v659, %v1314
        %v1462 = vmul.f32 %v660, %v1315
        %v1463 = vmul.f32 %v661, %v1316
        %v1464 = vmul.f32 %v662, %v1317
        %v1465 = vmul.f32 %v663, %v1318
        %v1466 = vmul.f32 %v664, %v1319
        %v1467 = vmul.f32 %v665, %v1320
        %v1468 = vmul.f32 %v666, %v1321
        %v1469 = vmul.f32 %v667, %v1322
        %v1470 = vmul.f32 %v668, %v1323
        %v1471 = vmul.f32 %v669, %v1324
        %v1472 = vmul.f32 %v670, %v1325
        %v1473 = vmul.f32 %v671, %v1326
        %v1474 = vmul.f32 %v672, %v1327
        %v1475 = vmul.f32 %v673, %v1328
        %v1476 = vmul.f32 %v674, %v1329
        %v1477 = vmul.f32 %v675, %v1330
        %v1478 = vmul.f32 %v676, %v1331
        %v1479 = vmul.f32 %v677, %v1332
        %v1480 = vmul.f32 %v678, %v1333
        %v1481 = vmul.f32 %v679, %v1334
        %v1482 = vmul.f32 %v680, %v1335
        %v1483 = vmul.f32 %v681, %v1336
        %v1484 = vmul.f32 %v682, %v1337
        %v1485 = vmul.f32 %v683, %v1338
        %v1486 = vmul.f32 %v684, %v1339
        %v1487 = vmul.f32 %v685, %v1340
        %v1488 = vmul.f32 %v686, %v1341
        %v1489 = vmul.f32 %v687, %v1342
        %v1490 = vmul.f32 %v688, %v1343
        %v1491 = vmul.f32 %v689, %v1344
        %v1492 = vmul.f32 %v690, %v1345
        %v1493 = vmul.f32 %v691, %v1346
        %v1494 = vmul.f32 %v692, %v1347
        %v1495 = vmul.f32 %v693, %v1348
        %v1496 = vmul.f32 %v694, %v1349
        %v1497 = vmul.f32 %v695, %v1350
        %v1498 = vmul.f32 %v696, %v1351
        %v1499 = vmul.f32 %v697, %v1352
        %v1500 = vmul.f32 %v698, %v1353
        %v1501 = vmul.f32 %v699, %v1354
        %v1502 = vmul.f32 %v700, %v1355
        %v1503 = vmul.f32 %v701, %v1356
        %v1504 = vmul.f32 %v702, %v1357
        %v1505 = vmul.f32 %v703, %v1358
        %v1506 = vmul.f32 %v704, %v1359
        %v1507 = vmul.f32 %v705, %v1360
        %v1508 = vmul.f32 %v706, %v1361
        %v1509 = vmul.f32 %v707, %v1362
        %v1510 = vmul.f32 %v708, %v1363
        %v1511 = vmul.f32 %v709, %v1364
        %v1512 = vmul.f32 %v710, %v1365
        %v1513 = vmul.f32 %v711, %v1366
        %v1514 = vmul.f32 %v712, %v1367
        %v1515 = vmul.f32 %v713, %v1368
        %v1516 = vmul.f32 %v714, %v1369
        %v1517 = vmul.f32 %v715, %v1370
        %v1518 = vmul.f32 %v716, %v1371
        %v1519 = vmul.f32 %v717, %v1372
        %v1520 = vmul.f32 %v718, %v1373
        %v1521 = vmul.f32 %v719, %v1374
        %v1522 = vmul.f32 %v720, %v1375
        %v1523 = vmul.f32 %v721, %v1376
        %v1524 = vmul.f32 %v722, %v1377
        %v1525 = vmul.f32 %v723, %v1378
        %v1526 = vmul.f32 %v724, %v1379
        %v1527 = vmul.f32 %v725, %v1380
        %v1528 = vmul.f32 %v726, %v1381
        %v1529 = vmul.f32 %v727, %v1382
        %v1530 = vmul.f32 %v728, %v1383
        %v1531 = vmul.f32 %v729, %v1384
        %v1532 = vmul.f32 %v730, %v1385
        %v1533 = vmul.f32 %v731, %v1386
        %v1534 = vmul.f32 %v732, %v1387
        %v1535 = vmul.f32 %v733, %v1388
        %v1536 = vmul.f32 %v734, %v1389
        %v1537 = vmul.f32 %v735, %v1390
        %v1538 = vmul.f32 %v736, %v1391
        %v1539 = vmul.f32 %v737, %v1392
        %v1540 = vmul.f32 %v738, %v1393
        %v1541 = vmul.f32 %v739, %v1394
        %v1542 = vmul.f32 %v740, %v1395
        %v1543 = vmul.f32 %v741, %v1396
        %v1544 = vmul.f32 %v742, %v1397
        %v1545 = vmul.f32 %v743, %v1398
        %v1546 = vmul.f32 %v744, %v1399
        %v1547 = vmul.f32 %v745, %v1400
        %v1548 = vmul.f32 %v746, %v1401
        %v1549 = vmul.f32 %v747, %v1402
        %v1550 = vmul.f32 %v748, %v1403
        %v1551 = vmul.f32 %v749, %v1404
        %v1552 = vmul.f32 %v750, %v1405
        %v1553 = vmul.f32 %v751, %v1406
        %v1554 = vmul.f32 %v752, %v1407
        %v1555 = vmul.f32 %v753, %v1408
        %v1556 = vmul.f32 %v754, %v1409
        %v1557 = vmul.f32 %v755, %v1410
        %v1559 = vlaneseq
        %v1560 = vshrl.u32 %v1559, 7
        %v1561 = vsub.s32 0, %v1560
        %v1562 = vrot.slane %v1247, %v1561
        %v1563 = vlaneseq
        %v1564 = vshrl.u32 %v1563, 7
        %v1565 = vsub.s32 1, %v1564
        %v1566 = vrot.slane %v1247, %v1565
        %v1567 = vlaneseq
        %v1568 = vshrl.u32 %v1567, 7
        %v1569 = vsub.s32 2, %v1568
        %v1570 = vrot.slane %v1247, %v1569
        %v1574 = vadd.f32 %v1411, %v1562
        %v1575 = vadd.f32 %v1412, %v1566
        %v1576 = vadd.f32 %v1413, %v1570
        %v1577 = vadd.f32 %v1414, %v1562
        %v1578 = vadd.f32 %v1415, %v1566
        %v1579 = vadd.f32 %v1416, %v1570
        %v1580 = vadd.f32 %v1417, %v1562
        %v1581 = vadd.f32 %v1418, %v1566
        %v1582 = vadd.f32 %v1419, %v1570
        %v1583 = vadd.f32 %v1420, %v1562
        %v1584 = vadd.f32 %v1421, %v1566
        %v1585 = vadd.f32 %v1422, %v1570
        %v1586 = vadd.f32 %v1423, %v1562
        %v1587 = vadd.f32 %v1424, %v1566
        %v1588 = vadd.f32 %v1425, %v1570
        %v1589 = vadd.f32 %v1426, %v1562
        %v1590 = vadd.f32 %v1427, %v1566
        %v1591 = vadd.f32 %v1428, %v1570
        %v1592 = vadd.f32 %v1429, %v1562
        %v1593 = vadd.f32 %v1430, %v1566
        %v1594 = vadd.f32 %v1431, %v1570
        %v1595 = vadd.f32 %v1432, %v1562
        %v1596 = vadd.f32 %v1433, %v1566
        %v1597 = vadd.f32 %v1434, %v1570
        %v1598 = vadd.f32 %v1435, %v1562
        %v1599 = vadd.f32 %v1436, %v1566
        %v1600 = vadd.f32 %v1437, %v1570
        %v1601 = vadd.f32 %v1438, %v1562
        %v1602 = vadd.f32 %v1439, %v1566
        %v1603 = vadd.f32 %v1440, %v1570
        %v1604 = vadd.f32 %v1441, %v1562
        %v1605 = vadd.f32 %v1442, %v1566
        %v1606 = vadd.f32 %v1443, %v1570
        %v1607 = vadd.f32 %v1444, %v1562
        %v1608 = vadd.f32 %v1445, %v1566
        %v1609 = vadd.f32 %v1446, %v1570
        %v1610 = vadd.f32 %v1447, %v1562
        %v1611 = vadd.f32 %v1448, %v1566
        %v1612 = vadd.f32 %v1449, %v1570
        %v1613 = vadd.f32 %v1450, %v1562
        %v1614 = vadd.f32 %v1451, %v1566
        %v1615 = vadd.f32 %v1452, %v1570
        %v1616 = vadd.f32 %v1453, %v1562
        %v1617 = vadd.f32 %v1454, %v1566
        %v1618 = vadd.f32 %v1455, %v1570
        %v1619 = vadd.f32 %v1456, %v1562
        %v1620 = vadd.f32 %v1457, %v1566
        %v1621 = vadd.f32 %v1458, %v1570
        %v1622 = vadd.f32 %v1459, %v1562
        %v1623 = vadd.f32 %v1460, %v1566
        %v1624 = vadd.f32 %v1461, %v1570
        %v1625 = vadd.f32 %v1462, %v1562
        %v1626 = vadd.f32 %v1463, %v1566
        %v1627 = vadd.f32 %v1464, %v1570
        %v1628 = vadd.f32 %v1465, %v1562
        %v1629 = vadd.f32 %v1466, %v1566
        %v1630 = vadd.f32 %v1467, %v1570
        %v1631 = vadd.f32 %v1468, %v1562
        %v1632 = vadd.f32 %v1469, %v1566
        %v1633 = vadd.f32 %v1470, %v1570
        %v1634 = vadd.f32 %v1471, %v1562
        %v1635 = vadd.f32 %v1472, %v1566
        %v1636 = vadd.f32 %v1473, %v1570
        %v1637 = vadd.f32 %v1474, %v1562
        %v1638 = vadd.f32 %v1475, %v1566
        %v1639 = vadd.f32 %v1476, %v1570
        %v1640 = vadd.f32 %v1477, %v1562
        %v1641 = vadd.f32 %v1478, %v1566
        %v1642 = vadd.f32 %v1479, %v1570
        %v1643 = vadd.f32 %v1480, %v1562
        %v1644 = vadd.f32 %v1481, %v1566
        %v1645 = vadd.f32 %v1482, %v1570
        %v1646 = vadd.f32 %v1483, %v1562
        %v1647 = vadd.f32 %v1484, %v1566
        %v1648 = vadd.f32 %v1485, %v1570
        %v1649 = vadd.f32 %v1486, %v1562
        %v1650 = vadd.f32 %v1487, %v1566
        %v1651 = vadd.f32 %v1488, %v1570
        %v1652 = vadd.f32 %v1489, %v1562
        %v1653 = vadd.f32 %v1490, %v1566
        %v1654 = vadd.f32 %v1491, %v1570
        %v1655 = vadd.f32 %v1492, %v1562
        %v1656 = vadd.f32 %v1493, %v1566
        %v1657 = vadd.f32 %v1494, %v1570
        %v1658 = vadd.f32 %v1495, %v1562
        %v1659 = vadd.f32 %v1496, %v1566
        %v1660 = vadd.f32 %v1497, %v1570
        %v1661 = vadd.f32 %v1498, %v1562
        %v1662 = vadd.f32 %v1499, %v1566
        %v1663 = vadd.f32 %v1500, %v1570
        %v1664 = vadd.f32 %v1501, %v1562
        %v1665 = vadd.f32 %v1502, %v1566
        %v1666 = vadd.f32 %v1503, %v1570
        %v1667 = vadd.f32 %v1504, %v1562
        %v1668 = vadd.f32 %v1505, %v1566
        %v1669 = vadd.f32 %v1506, %v1570
        %v1670 = vadd.f32 %v1507, %v1562
        %v1671 = vadd.f32 %v1508, %v1566
        %v1672 = vadd.f32 %v1509, %v1570
        %v1673 = vadd.f32 %v1510, %v1562
        %v1674 = vadd.f32 %v1511, %v1566
        %v1675 = vadd.f32 %v1512, %v1570
        %v1676 = vadd.f32 %v1513, %v1562
        %v1677 = vadd.f32 %v1514, %v1566
        %v1678 = vadd.f32 %v1515, %v1570
        %v1679 = vadd.f32 %v1516, %v1562
        %v1680 = vadd.f32 %v1517, %v1566
        %v1681 = vadd.f32 %v1518, %v1570
        %v1682 = vadd.f32 %v1519, %v1562
        %v1683 = vadd.f32 %v1520, %v1566
        %v1684 = vadd.f32 %v1521, %v1570
        %v1685 = vadd.f32 %v1522, %v1562
        %v1686 = vadd.f32 %v1523, %v1566
        %v1687 = vadd.f32 %v1524, %v1570
        %v1688 = vadd.f32 %v1525, %v1562
        %v1689 = vadd.f32 %v1526, %v1566
        %v1690 = vadd.f32 %v1527, %v1570
        %v1691 = vadd.f32 %v1528, %v1562
        %v1692 = vadd.f32 %v1529, %v1566
        %v1693 = vadd.f32 %v1530, %v1570
        %v1694 = vadd.f32 %v1531, %v1562
        %v1695 = vadd.f32 %v1532, %v1566
        %v1696 = vadd.f32 %v1533, %v1570
        %v1697 = vadd.f32 %v1534, %v1562
        %v1698 = vadd.f32 %v1535, %v1566
        %v1699 = vadd.f32 %v1536, %v1570
        %v1700 = vadd.f32 %v1537, %v1562
        %v1701 = vadd.f32 %v1538, %v1566
        %v1702 = vadd.f32 %v1539, %v1570
        %v1703 = vadd.f32 %v1540, %v1562
        %v1704 = vadd.f32 %v1541, %v1566
        %v1705 = vadd.f32 %v1542, %v1570
        %v1706 = vadd.f32 %v1543, %v1562
        %v1707 = vadd.f32 %v1544, %v1566
        %v1708 = vadd.f32 %v1545, %v1570
        %v1709 = vadd.f32 %v1546, %v1562
        %v1710 = vadd.f32 %v1547, %v1566
        %v1711 = vadd.f32 %v1548, %v1570
        %v1712 = vadd.f32 %v1549, %v1562
        %v1713 = vadd.f32 %v1550, %v1566
        %v1714 = vadd.f32 %v1551, %v1570
        %v1715 = vadd.f32 %v1552, %v1562
        %v1716 = vadd.f32 %v1553, %v1566
        %v1717 = vadd.f32 %v1554, %v1570
        %v1718 = vadd.f32 %v1555, %v1562
        %v1719 = vadd.f32 %v1556, %v1566
        %v1720 = vadd.f32 %v1557, %v1570
        %1721 = vst [vmem:[%s214] sm:$0xff] %v1574
        %1722 = vst [vmem:[%s214 + $0x8] sm:$0xff] %v1575
        %1723 = vst [vmem:[%s214 + $0x10] sm:$0xff] %v1576
        %1724 = vst [vmem:[%s214 + $0x18] sm:$0xff] %v1577
        %1725 = vst [vmem:[%s214 + $0x20] sm:$0xff] %v1578
        %1726 = vst [vmem:[%s214 + $0x28] sm:$0xff] %v1579
        %1727 = vst [vmem:[%s214 + $0x30] sm:$0xff] %v1580
        %1728 = vst [vmem:[%s214 + $0x38] sm:$0xff] %v1581
        %1729 = vst [vmem:[%s214 + $0x40] sm:$0xff] %v1582
        %1730 = vst [vmem:[%s214 + $0x48] sm:$0xff] %v1583
        %1731 = vst [vmem:[%s214 + $0x50] sm:$0xff] %v1584
        %1732 = vst [vmem:[%s214 + $0x58] sm:$0xff] %v1585
        %1733 = vst [vmem:[%s214 + $0x60] sm:$0xff] %v1586
        %1734 = vst [vmem:[%s214 + $0x68] sm:$0xff] %v1587
        %1735 = vst [vmem:[%s214 + $0x70] sm:$0xff] %v1588
        %1736 = vst [vmem:[%s214 + $0x78] sm:$0xff] %v1589
        %1737 = vst [vmem:[%s214 + $0x80] sm:$0xff] %v1590
        %1738 = vst [vmem:[%s214 + $0x88] sm:$0xff] %v1591
        %1739 = vst [vmem:[%s214 + $0x90] sm:$0xff] %v1592
        %1740 = vst [vmem:[%s214 + $0x98] sm:$0xff] %v1593
        %1741 = vst [vmem:[%s214 + $0xa0] sm:$0xff] %v1594
        %1742 = vst [vmem:[%s214 + $0xa8] sm:$0xff] %v1595
        %1743 = vst [vmem:[%s214 + $0xb0] sm:$0xff] %v1596
        %1744 = vst [vmem:[%s214 + $0xb8] sm:$0xff] %v1597
        %1745 = vst [vmem:[%s214 + $0xc0] sm:$0xff] %v1598
        %1746 = vst [vmem:[%s214 + $0xc8] sm:$0xff] %v1599
        %1747 = vst [vmem:[%s214 + $0xd0] sm:$0xff] %v1600
        %1748 = vst [vmem:[%s214 + $0xd8] sm:$0xff] %v1601
        %1749 = vst [vmem:[%s214 + $0xe0] sm:$0xff] %v1602
        %1750 = vst [vmem:[%s214 + $0xe8] sm:$0xff] %v1603
        %1751 = vst [vmem:[%s214 + $0xf0] sm:$0xff] %v1604
        %1752 = vst [vmem:[%s214 + $0xf8] sm:$0xff] %v1605
        %1753 = vst [vmem:[%s214 + $0x100] sm:$0xff] %v1606
        %1754 = vst [vmem:[%s214 + $0x108] sm:$0xff] %v1607
        %1755 = vst [vmem:[%s214 + $0x110] sm:$0xff] %v1608
        %1756 = vst [vmem:[%s214 + $0x118] sm:$0xff] %v1609
        %1757 = vst [vmem:[%s214 + $0x120] sm:$0xff] %v1610
        %1758 = vst [vmem:[%s214 + $0x128] sm:$0xff] %v1611
        %1759 = vst [vmem:[%s214 + $0x130] sm:$0xff] %v1612
        %1760 = vst [vmem:[%s214 + $0x138] sm:$0xff] %v1613
        %1761 = vst [vmem:[%s214 + $0x140] sm:$0xff] %v1614
        %1762 = vst [vmem:[%s214 + $0x148] sm:$0xff] %v1615
        %1763 = vst [vmem:[%s214 + $0x150] sm:$0xff] %v1616
        %1764 = vst [vmem:[%s214 + $0x158] sm:$0xff] %v1617
        %1765 = vst [vmem:[%s214 + $0x160] sm:$0xff] %v1618
        %1766 = vst [vmem:[%s214 + $0x168] sm:$0xff] %v1619
        %1767 = vst [vmem:[%s214 + $0x170] sm:$0xff] %v1620
        %1768 = vst [vmem:[%s214 + $0x178] sm:$0xff] %v1621
        %1769 = vst [vmem:[%s214 + $0x180] sm:$0xff] %v1622
        %1770 = vst [vmem:[%s214 + $0x188] sm:$0xff] %v1623
        %1771 = vst [vmem:[%s214 + $0x190] sm:$0xff] %v1624
        %1772 = vst [vmem:[%s214 + $0x198] sm:$0xff] %v1625
        %1773 = vst [vmem:[%s214 + $0x1a0] sm:$0xff] %v1626
        %1774 = vst [vmem:[%s214 + $0x1a8] sm:$0xff] %v1627
        %1775 = vst [vmem:[%s214 + $0x1b0] sm:$0xff] %v1628
        %1776 = vst [vmem:[%s214 + $0x1b8] sm:$0xff] %v1629
        %1777 = vst [vmem:[%s214 + $0x1c0] sm:$0xff] %v1630
        %1778 = vst [vmem:[%s214 + $0x1c8] sm:$0xff] %v1631
        %1779 = vst [vmem:[%s214 + $0x1d0] sm:$0xff] %v1632
        %1780 = vst [vmem:[%s214 + $0x1d8] sm:$0xff] %v1633
        %1781 = vst [vmem:[%s214 + $0x1e0] sm:$0xff] %v1634
        %1782 = vst [vmem:[%s214 + $0x1e8] sm:$0xff] %v1635
        %1783 = vst [vmem:[%s214 + $0x1f0] sm:$0xff] %v1636
        %1784 = vst [vmem:[%s214 + $0x1f8] sm:$0xff] %v1637
        %1785 = vst [vmem:[%s214 + $0x200] sm:$0xff] %v1638
        %1786 = vst [vmem:[%s214 + $0x208] sm:$0xff] %v1639
        %1787 = vst [vmem:[%s214 + $0x210] sm:$0xff] %v1640
        %1788 = vst [vmem:[%s214 + $0x218] sm:$0xff] %v1641
        %1789 = vst [vmem:[%s214 + $0x220] sm:$0xff] %v1642
        %1790 = vst [vmem:[%s214 + $0x228] sm:$0xff] %v1643
        %1791 = vst [vmem:[%s214 + $0x230] sm:$0xff] %v1644
        %1792 = vst [vmem:[%s214 + $0x238] sm:$0xff] %v1645
        %1793 = vst [vmem:[%s214 + $0x240] sm:$0xff] %v1646
        %1794 = vst [vmem:[%s214 + $0x248] sm:$0xff] %v1647
        %1795 = vst [vmem:[%s214 + $0x250] sm:$0xff] %v1648
        %1796 = vst [vmem:[%s214 + $0x258] sm:$0xff] %v1649
        %1797 = vst [vmem:[%s214 + $0x260] sm:$0xff] %v1650
        %1798 = vst [vmem:[%s214 + $0x268] sm:$0xff] %v1651
        %1799 = vst [vmem:[%s214 + $0x270] sm:$0xff] %v1652
        %1800 = vst [vmem:[%s214 + $0x278] sm:$0xff] %v1653
        %1801 = vst [vmem:[%s214 + $0x280] sm:$0xff] %v1654
        %1802 = vst [vmem:[%s214 + $0x288] sm:$0xff] %v1655
        %1803 = vst [vmem:[%s214 + $0x290] sm:$0xff] %v1656
        %1804 = vst [vmem:[%s214 + $0x298] sm:$0xff] %v1657
        %1805 = vst [vmem:[%s214 + $0x2a0] sm:$0xff] %v1658
        %1806 = vst [vmem:[%s214 + $0x2a8] sm:$0xff] %v1659
        %1807 = vst [vmem:[%s214 + $0x2b0] sm:$0xff] %v1660
        %1808 = vst [vmem:[%s214 + $0x2b8] sm:$0xff] %v1661
        %1809 = vst [vmem:[%s214 + $0x2c0] sm:$0xff] %v1662
        %1810 = vst [vmem:[%s214 + $0x2c8] sm:$0xff] %v1663
        %1811 = vst [vmem:[%s214 + $0x2d0] sm:$0xff] %v1664
        %1812 = vst [vmem:[%s214 + $0x2d8] sm:$0xff] %v1665
        %1813 = vst [vmem:[%s214 + $0x2e0] sm:$0xff] %v1666
        %1814 = vst [vmem:[%s214 + $0x2e8] sm:$0xff] %v1667
        %1815 = vst [vmem:[%s214 + $0x2f0] sm:$0xff] %v1668
        %1816 = vst [vmem:[%s214 + $0x2f8] sm:$0xff] %v1669
        %1817 = vst [vmem:[%s214 + $0x300] sm:$0xff] %v1670
        %1818 = vst [vmem:[%s214 + $0x308] sm:$0xff] %v1671
        %1819 = vst [vmem:[%s214 + $0x310] sm:$0xff] %v1672
        %1820 = vst [vmem:[%s214 + $0x318] sm:$0xff] %v1673
        %1821 = vst [vmem:[%s214 + $0x320] sm:$0xff] %v1674
        %1822 = vst [vmem:[%s214 + $0x328] sm:$0xff] %v1675
        %1823 = vst [vmem:[%s214 + $0x330] sm:$0xff] %v1676
        %1824 = vst [vmem:[%s214 + $0x338] sm:$0xff] %v1677
        %1825 = vst [vmem:[%s214 + $0x340] sm:$0xff] %v1678
        %1826 = vst [vmem:[%s214 + $0x348] sm:$0xff] %v1679
        %1827 = vst [vmem:[%s214 + $0x350] sm:$0xff] %v1680
        %1828 = vst [vmem:[%s214 + $0x358] sm:$0xff] %v1681
        %1829 = vst [vmem:[%s214 + $0x360] sm:$0xff] %v1682
        %1830 = vst [vmem:[%s214 + $0x368] sm:$0xff] %v1683
        %1831 = vst [vmem:[%s214 + $0x370] sm:$0xff] %v1684
        %1832 = vst [vmem:[%s214 + $0x378] sm:$0xff] %v1685
        %1833 = vst [vmem:[%s214 + $0x380] sm:$0xff] %v1686
        %1834 = vst [vmem:[%s214 + $0x388] sm:$0xff] %v1687
        %1835 = vst [vmem:[%s214 + $0x390] sm:$0xff] %v1688
        %1836 = vst [vmem:[%s214 + $0x398] sm:$0xff] %v1689
        %1837 = vst [vmem:[%s214 + $0x3a0] sm:$0xff] %v1690
        %1838 = vst [vmem:[%s214 + $0x3a8] sm:$0xff] %v1691
        %1839 = vst [vmem:[%s214 + $0x3b0] sm:$0xff] %v1692
        %1840 = vst [vmem:[%s214 + $0x3b8] sm:$0xff] %v1693
        %1841 = vst [vmem:[%s214 + $0x3c0] sm:$0xff] %v1694
        %1842 = vst [vmem:[%s214 + $0x3c8] sm:$0xff] %v1695
        %1843 = vst [vmem:[%s214 + $0x3d0] sm:$0xff] %v1696
        %1844 = vst [vmem:[%s214 + $0x3d8] sm:$0xff] %v1697
        %1845 = vst [vmem:[%s214 + $0x3e0] sm:$0xff] %v1698
        %1846 = vst [vmem:[%s214 + $0x3e8] sm:$0xff] %v1699
        %1847 = vst [vmem:[%s214 + $0x3f0] sm:$0xff] %v1700
        %1848 = vst [vmem:[%s214 + $0x3f8] sm:$0xff] %v1701
        %1849 = vst [vmem:[%s214 + $0x400] sm:$0xff] %v1702
        %1850 = vst [vmem:[%s214 + $0x408] sm:$0xff] %v1703
        %1851 = vst [vmem:[%s214 + $0x410] sm:$0xff] %v1704
        %1852 = vst [vmem:[%s214 + $0x418] sm:$0xff] %v1705
        %1853 = vst [vmem:[%s214 + $0x420] sm:$0xff] %v1706
        %1854 = vst [vmem:[%s214 + $0x428] sm:$0xff] %v1707
        %1855 = vst [vmem:[%s214 + $0x430] sm:$0xff] %v1708
        %1856 = vst [vmem:[%s214 + $0x438] sm:$0xff] %v1709
        %1857 = vst [vmem:[%s214 + $0x440] sm:$0xff] %v1710
        %1858 = vst [vmem:[%s214 + $0x448] sm:$0xff] %v1711
        %1859 = vst [vmem:[%s214 + $0x450] sm:$0xff] %v1712
        %1860 = vst [vmem:[%s214 + $0x458] sm:$0xff] %v1713
        %1861 = vst [vmem:[%s214 + $0x460] sm:$0xff] %v1714
        %1862 = vst [vmem:[%s214 + $0x468] sm:$0xff] %v1715
        %1863 = vst [vmem:[%s214 + $0x470] sm:$0xff] %v1716
        %1864 = vst [vmem:[%s214 + $0x478] sm:$0xff] %v1717
        %1865 = vst [vmem:[%s214 + $0x480] sm:$0xff] %v1718
        %1866 = vst [vmem:[%s214 + $0x488] sm:$0xff] %v1719
        %1867 = vst [vmem:[%s214 + $0x490] sm:$0xff] %v1720
        %s1868 = sand.u32 %s97, 1
        %s1869 = scalar_lea.sflag [#allocation4], %s1868
        %s1870 = sand.u32 %s97, 1
        %s1871 = smul.addr %s1870, 1176
        %s1872 = scalar_lea.vmem [#allocation8], %s1871
        // Predicated region
        $region45: #{tpu_custom_call.1} parent=31 // pred_check
          %p1873 = pneg %p107
        $region46: #{tpu_custom_call.1} parent=31 // pred_check_branch
          %1875 = sbr.rel (%p1873) target = $region48
        $region47: #{tpu_custom_call.1} parent=31 // pred_region
          %s1876 = smul.u32 49, %s21
          %s1878 = ssub.s32 18816, 18816
          %1879 = vsyncadd %s1869, %s1878
          %s1880 = smul.addr %s1876, 3
          %s1881 = smul.addr %s1880, 128
          %s1882 = scalar_lea.hbm %s3, %s1881
          %s1883 = sshll.u32 %s1872, 4
          %s1884 = int_to_ptr.vmem [resolvable:$true] %s1883
          %1889 = dma.vmem_to_hbm [thread:$0]  %s1884, 18816, %s1882, %s1869, 384, 384, 24
        $region48: #{tpu_custom_call.1} parent=31 // pred_fallthru
          _
      $region32: #{tpu_custom_call.1} parent=5 // pred_fallthru
        _
      %p1890 = scmp.le.s32.totalorder 2, %s16
      // Predicated region
      $region49: #{tpu_custom_call.1} parent=5 // pred_check
        %p1891 = pneg %p1890
      $region50: #{tpu_custom_call.1} parent=5 // pred_check_branch
        %1893 = sbr.rel (%p1891) target = $region52
      $region51: #{tpu_custom_call.1} parent=5 // pred_region
        %s1894 = ssub.s32 %s16, 2
        // Predicated region
        $region53: #{tpu_custom_call.1} parent=51 // pred_check
          %p1895 = pneg %p113
        $region54: #{tpu_custom_call.1} parent=51 // pred_check_branch
          %1897 = sbr.rel (%p1895) target = $region56
        $region55: #{tpu_custom_call.1} parent=51 // pred_region
          %s1898 = sand.u32 %s98, 1
          %s1899 = scalar_lea.sflag [#allocation4], %s1898
          %s1900 = sand.u32 %s98, 1
          %s1901 = smul.addr %s1900, 1176
          %s1902 = scalar_lea.vmem [#allocation8], %s1901
          %1903 = dma.done %s1899, 18816
        $region56: #{tpu_custom_call.1} parent=51 // pred_fallthru
          _
      $region52: #{tpu_custom_call.1} parent=5 // pred_fallthru
        _
    $region6: #{tpu_custom_call.1} parent=1 // loop_footer
      %s20 = sadd.s32 1, %s16
    $region7: #{tpu_custom_call.1} parent=1 // loop_footer_branch
      %15 = sbr.rel target = $region3
    $region8: #{tpu_custom_call.1} parent=1 // loop_exit
      _
    %1904 = vsyncpa [#allocation3], 1
    %s1905 = scalar_lea.sflag [#allocation3], 1
    %1906 = vsyncpa %s1905, 1
    %1907 = vsyncpa [#allocation6], 1
    %1908 = vsyncpa [#allocation4], 1
    %s1909 = scalar_lea.sflag [#allocation4], 1
    %1910 = vsyncpa %s1909, 1

</llo_original>
